<compile_context>
chip_gen: v6e
topology: v6e:2x2x1
jax: 0.10.0
libtpu: 0.0.40
codegen_flags: <defaults>
</compile_context>

<pallas_src>
import jax
import jax.numpy as jnp
from jax import lax
from jax.experimental import pallas as pl
from jax.experimental.pallas import tpu as pltpu


LANE = 128  # TPU lane width: pad all feature dims to this for lane-dense vregs.


def _round_up(x, m):
    return (x + m - 1) // m * m


# ----------------------------- Fused Pallas kernel ---------------------------

def _make_fused_graphsage_kernel(num_layers, out_feats):
    """Kernel computing one graph's full GraphSAGE forward pass, VMEM-resident.

    Ref layout:
      a_ref  [N, N]        bf16 row-normalized adjacency
      x_ref  [N, Dpad]     bf16 node features (lane-padded)
      then per layer: w_self_t, w_neigh_t, each [Dpad_in, Dpad_out] bf16
      o_ref  [N, Dpad_out] f32 log-probabilities (lane-dense, host slices)
    """

    def kernel(a_ref, x_ref, *rest):
        w_refs = rest[:2 * num_layers]
        o_ref = rest[2 * num_layers]

        a = a_ref[...]                       # [N, N] bf16
        h = x_ref[...]                       # [N, Dpad] bf16 (promoted as needed)

        for li in range(num_layers):
            hb = h.astype(jnp.bfloat16)
            # Mean-aggregated neighbor features (bf16 MXU, f32 accumulate).
            neigh = jnp.dot(a, hb, preferred_element_type=jnp.float32)
            # Two MXU dots summed in f32 (no lane-axis concatenate / relayout).
            ws_t = w_refs[2 * li][...]
            wn_t = w_refs[2 * li + 1][...]
            h = (jnp.dot(hb, ws_t, preferred_element_type=jnp.float32)
                 + jnp.dot(neigh.astype(jnp.bfloat16), wn_t,
                           preferred_element_type=jnp.float32))

            if li < num_layers - 1:
                # BatchNorm1d: training-mode batch statistics over the full
                # node dimension (exact, no row tiling), affine identity
                # (gamma=1, beta=0), eps=1e-5.  Padded (all-zero) feature
                # lanes stay exactly zero through this path.
                mean = jnp.mean(h, axis=0, keepdims=True)
                ctr = h - mean
                var = jnp.mean(ctr * ctr, axis=0, keepdims=True)  # biased var
                h = ctr * lax.rsqrt(var + 1e-5)
                h = jnp.maximum(h, 0.0)                            # ReLU
                # TODO(synk): Dropout is eval-mode identity (no in-kernel RNG).

        # log_softmax over the *valid* output lanes only; store a lane-dense
        # [N, Dpad_out] slab so the writeback is an unmasked full-width vst.
        lane = lax.broadcasted_iota(jnp.int32, h.shape, dimension=1)
        valid = lane < out_feats
        hm = jnp.where(valid, h, jnp.float32(-1e30))
        m = jnp.max(hm, axis=-1, keepdims=True)
        s = hm - m
        lse = jnp.log(jnp.sum(jnp.exp(s), axis=-1, keepdims=True))
        o_ref[...] = jnp.where(valid, s - lse, 0.0)

    return kernel


# ------------------------------ Host wrapper ---------------------------------

def graphsage_forward(a_norm, x_pad, weights, out_feats):
    """a_norm: [B,N,N] bf16; x_pad: [B,N,Dpad] bf16;
    weights: flat list [ws0_t, wn0_t, ws1_t, wn1_t, ...], each [Din_pad, Dout_pad] bf16."""
    num_layers = len(weights) // 2
    b_graphs, n, _ = a_norm.shape
    d_pad = x_pad.shape[-1]
    d_out_pad = weights[-1].shape[-1]

    # Advisory cost estimate for the XLA scheduler.
    flops = 0
    bytes_accessed = (a_norm.size * a_norm.dtype.itemsize
                      + x_pad.size * x_pad.dtype.itemsize)
    transcendentals = 0
    d_in = d_pad
    for li in range(num_layers):
        d_o = weights[2 * li].shape[1]
        flops += b_graphs * 2 * n * n * d_in              # A_norm @ h
        flops += b_graphs * 2 * n * d_in * d_o * 2        # two projection dots
        bytes_accessed += 2 * weights[2 * li].size * weights[2 * li].dtype.itemsize
        if li < num_layers - 1:
            transcendentals += b_graphs * d_o             # rsqrt per feature (BN)
        d_in = d_o
    transcendentals += b_graphs * n * (d_out_pad + 1)     # exp + log (log_softmax)
    bytes_accessed += b_graphs * n * d_out_pad * 4        # f32 output writeback

    kernel = _make_fused_graphsage_kernel(num_layers, out_feats)

    # Weights: full-array blocks with a constant index_map -> stay VMEM-resident.
    weight_specs = [pl.BlockSpec(w.shape, lambda b: (0, 0)) for w in weights]

    grid_spec = pltpu.PrefetchScalarGridSpec(
        num_scalar_prefetch=0,
        grid=(b_graphs,),
        in_specs=[pl.BlockSpec((None, n, n), lambda b: (b, 0, 0)),
                  pl.BlockSpec((None, n, d_pad), lambda b: (b, 0, 0))]
                 + weight_specs,
        out_specs=pl.BlockSpec((None, n, d_out_pad), lambda b: (b, 0, 0)),
    )

    out_full = pl.pallas_call(
        kernel,
        out_shape=jax.ShapeDtypeStruct((b_graphs, n, d_out_pad), jnp.float32),
        grid_spec=grid_spec,
        compiler_params=pltpu.CompilerParams(
            dimension_semantics=("parallel",),          # graphs are independent
            vmem_limit_bytes=32 * 1024 * 1024,
        ),
        cost_estimate=pl.CostEstimate(
            flops=int(flops),
            transcendentals=int(transcendentals),
            bytes_accessed=int(bytes_accessed),
        ),
    )(a_norm, x_pad, *weights)

    # Slice the lane-padded output back to the logical out_feats on the host.
    return out_full[..., :out_feats]


# ----------------------------- Parameter setup -------------------------------

def init_graphsage_params(key, in_feats, hidden_feats, out_feats, num_layers):
    """torch-style xavier_uniform_(gain=sqrt(2)), stored transposed (in, out),
    zero-padded to lane-dense [Din_pad, Dout_pad] bf16."""
    gain = float(jnp.sqrt(2.0))                  # nn.init.calculate_gain('relu')
    dims = [in_feats] + [hidden_feats] * (num_layers - 1) + [out_feats]
    weights = []
    for li in range(num_layers):
        d_i, d_o = dims[li], dims[li + 1]
        d_i_pad, d_o_pad = _round_up(d_i, LANE), _round_up(d_o, LANE)
        key, k_self, k_neigh = jax.random.split(key, 3)
        for k in (k_self, k_neigh):
            bound = gain * float(jnp.sqrt(6.0 / (d_i + d_o)))
            w = jax.random.uniform(k, (d_o, d_i), jnp.float32, -bound, bound)
            w_t = jnp.transpose(w)                                  # (d_i, d_o)
            w_t = jnp.pad(w_t, ((0, d_i_pad - d_i), (0, d_o_pad - d_o)))
            weights.append(w_t.astype(jnp.bfloat16))
    return weights


# ------------------------- Pure-JAX reference (checks) -----------------------

def reference_forward(a_norm, x_pad, weights, out_feats, num_layers):
    """Same math as the kernel (matched bf16 casts, f32 accumulation)."""
    a = a_norm.astype(jnp.bfloat16)
    h = x_pad.astype(jnp.float32)
    for li in range(num_layers):
        hb = h.astype(jnp.bfloat16)
        neigh = jnp.einsum('bnm,bmd->bnd', a, hb,
                           preferred_element_type=jnp.float32)
        h = (jnp.einsum('bnd,de->bne', hb, weights[2 * li],
                        preferred_element_type=jnp.float32)
             + jnp.einsum('bnd,de->bne', neigh.astype(jnp.bfloat16),
                          weights[2 * li + 1],
                          preferred_element_type=jnp.float32))
        if li < num_layers - 1:
            mean = jnp.mean(h, axis=1, keepdims=True)
            ctr = h - mean
            var = jnp.mean(ctr * ctr, axis=1, keepdims=True)
            h = ctr * lax.rsqrt(var + 1e-5)
            h = jnp.maximum(h, 0.0)
    return jax.nn.log_softmax(h[..., :out_feats], axis=-1)


# ----------------------------------- Main -------------------------------------

if __name__ == "__main__":
    key = jax.random.PRNGKey(0)

    B = 4             # graphs per call (parallel grid axis)
    N = 64            # nodes per graph
    in_feats = 32
    hidden_feats = 32
    out_feats = 16
    num_layers = 3
    dropout = 0.5     # unused at inference (eval-mode identity)

    key, k_adj, k_feat, k_param = jax.random.split(key, 4)

    # Random directed graphs as dense adjacency; A[b, i, j] = 1 if edge j -> i.
    adj = (jax.random.uniform(k_adj, (B, N, N)) < 0.1).astype(jnp.float32)
    in_deg = jnp.sum(adj, axis=-1, keepdims=True)
    # DGL mean aggregation: zero in-degree -> zero neighbor feature.
    a_norm = (adj / jnp.maximum(in_deg, 1.0)).astype(jnp.bfloat16)
    # TODO(synk): on v7x the adjacency could be stored fp8 (e4m3) for 2x MXU
    # throughput; kept bf16 here for portability across v5e/v6e/v7x.

    x = jax.random.normal(k_feat, (B, N, in_feats), jnp.float32)
    d_pad = _round_up(in_feats, LANE)
    x_pad = jnp.pad(x, ((0, 0), (0, 0), (0, d_pad - in_feats))).astype(jnp.bfloat16)

    weights = init_graphsage_params(k_param, in_feats, hidden_feats, out_feats,
                                    num_layers)

    out = graphsage_forward(a_norm, x_pad, weights, out_feats)
    out = jax.block_until_ready(out)

    assert out.shape == (B, N, out_feats)
    assert bool(jnp.all(jnp.isfinite(out)))
    # log_softmax rows should sum (in prob space) to ~1
    assert bool(jnp.allclose(jnp.sum(jnp.exp(out), axis=-1), 1.0, atol=1e-4))

    ref = reference_forward(a_norm, x_pad, weights, out_feats, num_layers)
    ref = jax.block_until_ready(ref)
    assert bool(jnp.allclose(out, ref, atol=5e-2, rtol=5e-2))

    print("KERNEL_OK")
</pallas_src>

<mosaic_0001>
module attributes {stable_mosaic.version = 11 : i64} {
  func.func @kernel(%arg0: i32, %arg1: memref<1x64x64xbf16, #tpu.memory_space<vmem>>, %arg2: memref<1x64x128xbf16, #tpu.memory_space<vmem>>, %arg3: memref<128x128xbf16, #tpu.memory_space<vmem>>, %arg4: memref<128x128xbf16, #tpu.memory_space<vmem>>, %arg5: memref<128x128xbf16, #tpu.memory_space<vmem>>, %arg6: memref<128x128xbf16, #tpu.memory_space<vmem>>, %arg7: memref<128x128xbf16, #tpu.memory_space<vmem>>, %arg8: memref<128x128xbf16, #tpu.memory_space<vmem>>, %arg9: memref<1x64x128xf32, #tpu.memory_space<vmem>>) attributes {dimension_semantics = [#tpu.dimension_semantics<parallel>], iteration_bounds = array<i64: 4>, scalar_prefetch = 0 : i64, scratch_operands = 0 : i64, tpu.core_type = #tpu.core_type<tc>, window_params = [{transform_indices = @transform_0, window_bounds = array<i64: 1, 64, 64>}, {transform_indices = @transform_1, window_bounds = array<i64: 1, 64, 128>}, {pipeline_mode = #tpu.pipeline_mode<synchronous>, transform_indices = @transform_2, window_bounds = array<i64: 128, 128>}, {pipeline_mode = #tpu.pipeline_mode<synchronous>, transform_indices = @transform_3, window_bounds = array<i64: 128, 128>}, {pipeline_mode = #tpu.pipeline_mode<synchronous>, transform_indices = @transform_4, window_bounds = array<i64: 128, 128>}, {pipeline_mode = #tpu.pipeline_mode<synchronous>, transform_indices = @transform_5, window_bounds = array<i64: 128, 128>}, {pipeline_mode = #tpu.pipeline_mode<synchronous>, transform_indices = @transform_6, window_bounds = array<i64: 128, 128>}, {pipeline_mode = #tpu.pipeline_mode<synchronous>, transform_indices = @transform_7, window_bounds = array<i64: 128, 128>}, {transform_indices = @transform_8, window_bounds = array<i64: 1, 64, 128>}]} {
    %c0 = arith.constant 0 : index
    %c0_0 = arith.constant 0 : index
    %c0_1 = arith.constant 0 : index
    %0 = vector.load %arg1[%c0, %c0_0, %c0_1] : memref<1x64x64xbf16, #tpu.memory_space<vmem>>, vector<1x64x64xbf16>
    %1 = vector.shape_cast %0 : vector<1x64x64xbf16> to vector<64x64xbf16>
    %c0_2 = arith.constant 0 : index
    %c0_3 = arith.constant 0 : index
    %c0_4 = arith.constant 0 : index
    %2 = vector.load %arg2[%c0_2, %c0_3, %c0_4] : memref<1x64x128xbf16, #tpu.memory_space<vmem>>, vector<1x64x128xbf16>
    %3 = vector.shape_cast %2 : vector<1x64x128xbf16> to vector<64x128xbf16>
    %cst = arith.constant dense<0.000000e+00> : vector<64x128xf32>
    %4 = tpu.matmul %1, %3, %cst {dimension_numbers = #tpu.dot_dimension_numbers<[1], [0], [0], [1], [0, 0, 1, 1], [], []>} : vector<64x64xbf16>, vector<64x128xbf16>, vector<64x128xf32> -> vector<64x128xf32>
    %c0_5 = arith.constant 0 : index
    %c0_6 = arith.constant 0 : index
    %5 = vector.load %arg3[%c0_5, %c0_6] : memref<128x128xbf16, #tpu.memory_space<vmem>>, vector<128x128xbf16>
    %c0_7 = arith.constant 0 : index
    %c0_8 = arith.constant 0 : index
    %6 = vector.load %arg4[%c0_7, %c0_8] : memref<128x128xbf16, #tpu.memory_space<vmem>>, vector<128x128xbf16>
    %cst_9 = arith.constant dense<0.000000e+00> : vector<64x128xf32>
    %7 = tpu.matmul %3, %5, %cst_9 {dimension_numbers = #tpu.dot_dimension_numbers<[1], [0], [0], [1], [0, 0, 1, 1], [], []>} : vector<64x128xbf16>, vector<128x128xbf16>, vector<64x128xf32> -> vector<64x128xf32>
    %8 = arith.truncf %4 : vector<64x128xf32> to vector<64x128xbf16>
    %cst_10 = arith.constant dense<0.000000e+00> : vector<64x128xf32>
    %9 = tpu.matmul %8, %6, %cst_10 {dimension_numbers = #tpu.dot_dimension_numbers<[1], [0], [0], [1], [0, 0, 1, 1], [], []>} : vector<64x128xbf16>, vector<128x128xbf16>, vector<64x128xf32> -> vector<64x128xf32>
    %10 = arith.addf %7, %9 : vector<64x128xf32>
    %cst_11 = arith.constant dense<0.000000e+00> : vector<128xf32>
    %11 = vector.multi_reduction <add>, %10, %cst_11 [0] : vector<64x128xf32> to vector<128xf32>
    %12 = vector.shape_cast %11 : vector<128xf32> to vector<1x128xf32>
    %cst_12 = arith.constant 6.400000e+01 : f32
    %13 = vector.broadcast %cst_12 : f32 to vector<1x128xf32>
    %14 = arith.divf %12, %13 : vector<1x128xf32>
    %15 = vector.broadcast %14 : vector<1x128xf32> to vector<64x128xf32>
    %16 = arith.subf %10, %15 : vector<64x128xf32>
    %17 = arith.mulf %16, %16 : vector<64x128xf32>
    %cst_13 = arith.constant dense<0.000000e+00> : vector<128xf32>
    %18 = vector.multi_reduction <add>, %17, %cst_13 [0] : vector<64x128xf32> to vector<128xf32>
    %19 = vector.shape_cast %18 : vector<128xf32> to vector<1x128xf32>
    %cst_14 = arith.constant 6.400000e+01 : f32
    %20 = vector.broadcast %cst_14 : f32 to vector<1x128xf32>
    %21 = arith.divf %19, %20 : vector<1x128xf32>
    %cst_15 = arith.constant 9.99999974E-6 : f32
    %22 = vector.broadcast %cst_15 : f32 to vector<1x128xf32>
    %23 = arith.addf %21, %22 : vector<1x128xf32>
    %24 = math.rsqrt %23 : vector<1x128xf32>
    %25 = vector.broadcast %24 : vector<1x128xf32> to vector<64x128xf32>
    %26 = arith.mulf %16, %25 : vector<64x128xf32>
    %cst_16 = arith.constant 0.000000e+00 : f32
    %27 = vector.broadcast %cst_16 : f32 to vector<64x128xf32>
    %28 = arith.maximumf %26, %27 : vector<64x128xf32>
    %29 = arith.truncf %28 : vector<64x128xf32> to vector<64x128xbf16>
    %cst_17 = arith.constant dense<0.000000e+00> : vector<64x128xf32>
    %30 = tpu.matmul %1, %29, %cst_17 {dimension_numbers = #tpu.dot_dimension_numbers<[1], [0], [0], [1], [0, 0, 1, 1], [], []>} : vector<64x64xbf16>, vector<64x128xbf16>, vector<64x128xf32> -> vector<64x128xf32>
    %c0_18 = arith.constant 0 : index
    %c0_19 = arith.constant 0 : index
    %31 = vector.load %arg5[%c0_18, %c0_19] : memref<128x128xbf16, #tpu.memory_space<vmem>>, vector<128x128xbf16>
    %c0_20 = arith.constant 0 : index
    %c0_21 = arith.constant 0 : index
    %32 = vector.load %arg6[%c0_20, %c0_21] : memref<128x128xbf16, #tpu.memory_space<vmem>>, vector<128x128xbf16>
    %cst_22 = arith.constant dense<0.000000e+00> : vector<64x128xf32>
    %33 = tpu.matmul %29, %31, %cst_22 {dimension_numbers = #tpu.dot_dimension_numbers<[1], [0], [0], [1], [0, 0, 1, 1], [], []>} : vector<64x128xbf16>, vector<128x128xbf16>, vector<64x128xf32> -> vector<64x128xf32>
    %34 = arith.truncf %30 : vector<64x128xf32> to vector<64x128xbf16>
    %cst_23 = arith.constant dense<0.000000e+00> : vector<64x128xf32>
    %35 = tpu.matmul %34, %32, %cst_23 {dimension_numbers = #tpu.dot_dimension_numbers<[1], [0], [0], [1], [0, 0, 1, 1], [], []>} : vector<64x128xbf16>, vector<128x128xbf16>, vector<64x128xf32> -> vector<64x128xf32>
    %36 = arith.addf %33, %35 : vector<64x128xf32>
    %cst_24 = arith.constant dense<0.000000e+00> : vector<128xf32>
    %37 = vector.multi_reduction <add>, %36, %cst_24 [0] : vector<64x128xf32> to vector<128xf32>
    %38 = vector.shape_cast %37 : vector<128xf32> to vector<1x128xf32>
    %cst_25 = arith.constant 6.400000e+01 : f32
    %39 = vector.broadcast %cst_25 : f32 to vector<1x128xf32>
    %40 = arith.divf %38, %39 : vector<1x128xf32>
    %41 = vector.broadcast %40 : vector<1x128xf32> to vector<64x128xf32>
    %42 = arith.subf %36, %41 : vector<64x128xf32>
    %43 = arith.mulf %42, %42 : vector<64x128xf32>
    %cst_26 = arith.constant dense<0.000000e+00> : vector<128xf32>
    %44 = vector.multi_reduction <add>, %43, %cst_26 [0] : vector<64x128xf32> to vector<128xf32>
    %45 = vector.shape_cast %44 : vector<128xf32> to vector<1x128xf32>
    %cst_27 = arith.constant 6.400000e+01 : f32
    %46 = vector.broadcast %cst_27 : f32 to vector<1x128xf32>
    %47 = arith.divf %45, %46 : vector<1x128xf32>
    %cst_28 = arith.constant 9.99999974E-6 : f32
    %48 = vector.broadcast %cst_28 : f32 to vector<1x128xf32>
    %49 = arith.addf %47, %48 : vector<1x128xf32>
    %50 = math.rsqrt %49 : vector<1x128xf32>
    %51 = vector.broadcast %50 : vector<1x128xf32> to vector<64x128xf32>
    %52 = arith.mulf %42, %51 : vector<64x128xf32>
    %cst_29 = arith.constant 0.000000e+00 : f32
    %53 = vector.broadcast %cst_29 : f32 to vector<64x128xf32>
    %54 = arith.maximumf %52, %53 : vector<64x128xf32>
    %55 = arith.truncf %54 : vector<64x128xf32> to vector<64x128xbf16>
    %cst_30 = arith.constant dense<0.000000e+00> : vector<64x128xf32>
    %56 = tpu.matmul %1, %55, %cst_30 {dimension_numbers = #tpu.dot_dimension_numbers<[1], [0], [0], [1], [0, 0, 1, 1], [], []>} : vector<64x64xbf16>, vector<64x128xbf16>, vector<64x128xf32> -> vector<64x128xf32>
    %c0_31 = arith.constant 0 : index
    %c0_32 = arith.constant 0 : index
    %57 = vector.load %arg7[%c0_31, %c0_32] : memref<128x128xbf16, #tpu.memory_space<vmem>>, vector<128x128xbf16>
    %c0_33 = arith.constant 0 : index
    %c0_34 = arith.constant 0 : index
    %58 = vector.load %arg8[%c0_33, %c0_34] : memref<128x128xbf16, #tpu.memory_space<vmem>>, vector<128x128xbf16>
    %cst_35 = arith.constant dense<0.000000e+00> : vector<64x128xf32>
    %59 = tpu.matmul %55, %57, %cst_35 {dimension_numbers = #tpu.dot_dimension_numbers<[1], [0], [0], [1], [0, 0, 1, 1], [], []>} : vector<64x128xbf16>, vector<128x128xbf16>, vector<64x128xf32> -> vector<64x128xf32>
    %60 = arith.truncf %56 : vector<64x128xf32> to vector<64x128xbf16>
    %cst_36 = arith.constant dense<0.000000e+00> : vector<64x128xf32>
    %61 = tpu.matmul %60, %58, %cst_36 {dimension_numbers = #tpu.dot_dimension_numbers<[1], [0], [0], [1], [0, 0, 1, 1], [], []>} : vector<64x128xbf16>, vector<128x128xbf16>, vector<64x128xf32> -> vector<64x128xf32>
    %62 = arith.addf %59, %61 : vector<64x128xf32>
    %63 = tpu.iota {dimensions = array<i32: 1>} : vector<64x128xi32>
    %c16_i32 = arith.constant 16 : i32
    %64 = vector.broadcast %c16_i32 : i32 to vector<64x128xi32>
    %65 = arith.cmpi slt, %63, %64 : vector<64x128xi32>
    %cst_37 = arith.constant -1.000000e+30 : f32
    %66 = vector.broadcast %cst_37 : f32 to vector<64x128xf32>
    %67 = arith.select %65, %62, %66 : vector<64x128xi1>, vector<64x128xf32>
    %cst_38 = arith.constant dense<0xFF800000> : vector<64xf32>
    %68 = vector.multi_reduction <maximumf>, %67, %cst_38 [1] : vector<64x128xf32> to vector<64xf32>
    %69 = vector.shape_cast %68 : vector<64xf32> to vector<64x1xf32>
    %70 = vector.broadcast %69 : vector<64x1xf32> to vector<64x128xf32>
    %71 = arith.subf %67, %70 : vector<64x128xf32>
    %72 = math.exp %71 : vector<64x128xf32>
    %cst_39 = arith.constant dense<0.000000e+00> : vector<64xf32>
    %73 = vector.multi_reduction <add>, %72, %cst_39 [1] : vector<64x128xf32> to vector<64xf32>
    %74 = vector.shape_cast %73 : vector<64xf32> to vector<64x1xf32>
    %75 = math.log %74 : vector<64x1xf32>
    %76 = vector.broadcast %75 : vector<64x1xf32> to vector<64x128xf32>
    %77 = arith.subf %71, %76 : vector<64x128xf32>
    %cst_40 = arith.constant 0.000000e+00 : f32
    %78 = vector.broadcast %cst_40 : f32 to vector<64x128xf32>
    %79 = arith.select %65, %77, %78 : vector<64x128xi1>, vector<64x128xf32>
    %c0_41 = arith.constant 0 : index
    %c0_42 = arith.constant 0 : index
    %c0_43 = arith.constant 0 : index
    %80 = vector.load %arg9[%c0_41, %c0_42, %c0_43] : memref<1x64x128xf32, #tpu.memory_space<vmem>>, vector<1x64x128xf32>
    %81 = vector.shape_cast %80 : vector<1x64x128xf32> to vector<64x128xf32>
    %82 = vector.shape_cast %79 : vector<64x128xf32> to vector<1x64x128xf32>
    tpu.vector_store %arg9[%c0_41, %c0_42, %c0_43], %82 {strides = array<i32>} : memref<1x64x128xf32, #tpu.memory_space<vmem>>, vector<1x64x128xf32>,
    return
  }
  func.func @transform_0(%arg0: i32) -> (i32, i32, i32) {
    %c0_i32 = arith.constant 0 : i32
    %c0_i32_0 = arith.constant 0 : i32
    %c0_i32_1 = arith.constant 0 : i32
    return %arg0, %c0_i32, %c0_i32_0 : i32, i32, i32
  }
  func.func @transform_1(%arg0: i32) -> (i32, i32, i32) {
    %c0_i32 = arith.constant 0 : i32
    %c0_i32_0 = arith.constant 0 : i32
    %c0_i32_1 = arith.constant 0 : i32
    return %arg0, %c0_i32, %c0_i32_0 : i32, i32, i32
  }
  func.func @transform_2(%arg0: i32) -> (i32, i32) {
    %c0_i32 = arith.constant 0 : i32
    %c0_i32_0 = arith.constant 0 : i32
    %c0_i32_1 = arith.constant 0 : i32
    return %c0_i32, %c0_i32_0 : i32, i32
  }
  func.func @transform_3(%arg0: i32) -> (i32, i32) {
    %c0_i32 = arith.constant 0 : i32
    %c0_i32_0 = arith.constant 0 : i32
    %c0_i32_1 = arith.constant 0 : i32
    return %c0_i32, %c0_i32_0 : i32, i32
  }
  func.func @transform_4(%arg0: i32) -> (i32, i32) {
    %c0_i32 = arith.constant 0 : i32
    %c0_i32_0 = arith.constant 0 : i32
    %c0_i32_1 = arith.constant 0 : i32
    return %c0_i32, %c0_i32_0 : i32, i32
  }
  func.func @transform_5(%arg0: i32) -> (i32, i32) {
    %c0_i32 = arith.constant 0 : i32
    %c0_i32_0 = arith.constant 0 : i32
    %c0_i32_1 = arith.constant 0 : i32
    return %c0_i32, %c0_i32_0 : i32, i32
  }
  func.func @transform_6(%arg0: i32) -> (i32, i32) {
    %c0_i32 = arith.constant 0 : i32
    %c0_i32_0 = arith.constant 0 : i32
    %c0_i32_1 = arith.constant 0 : i32
    return %c0_i32, %c0_i32_0 : i32, i32
  }
  func.func @transform_7(%arg0: i32) -> (i32, i32) {
    %c0_i32 = arith.constant 0 : i32
    %c0_i32_0 = arith.constant 0 : i32
    %c0_i32_1 = arith.constant 0 : i32
    return %c0_i32, %c0_i32_0 : i32, i32
  }
  func.func @transform_8(%arg0: i32) -> (i32, i32, i32) {
    %c0_i32 = arith.constant 0 : i32
    %c0_i32_0 = arith.constant 0 : i32
    %c0_i32_1 = arith.constant 0 : i32
    return %arg0, %c0_i32, %c0_i32_0 : i32, i32, i32
  }
}

</mosaic_0001>

<llo_original>
// kernel: tpu_custom_call.1
$region0: #{tpu_custom_call.1}
  #allocation0 [shape = 'u32[]', space=smem, size = 0x4, offset = 0x4, fixed_abs, tag = 'smem constant byte address 0x4 - core index']
  #allocation1 [shape = 'u32[144,128]{1,0:T(1,128)}', space=vmem, size = 0x12000, scoped, tag = 'internal scratch']
  %s0 = inlined_call_operand.hbm [shape: bf16[4,64,64], index: 0, kind: input, shape index: {}]
  %s1 = inlined_call_operand.hbm [shape: bf16[4,64,128], index: 1, kind: input, shape index: {}]
  %s2 = inlined_call_operand.hbm [shape: bf16[128,128], index: 2, kind: input, shape index: {}]
  %s3 = inlined_call_operand.hbm [shape: bf16[128,128], index: 3, kind: input, shape index: {}]
  %s4 = inlined_call_operand.hbm [shape: bf16[128,128], index: 4, kind: input, shape index: {}]
  %s5 = inlined_call_operand.hbm [shape: bf16[128,128], index: 5, kind: input, shape index: {}]
  %s6 = inlined_call_operand.hbm [shape: bf16[128,128], index: 6, kind: input, shape index: {}]
  %s7 = inlined_call_operand.hbm [shape: bf16[128,128], index: 7, kind: input, shape index: {}]
  %s8 = inlined_call_operand.hbm [shape: f32[4,64,128], index: 8, kind: output, shape index: {}]
  %s9 = sld [smem:[#allocation0]]
  $region97: #{tpu_custom_call.1} parent=0
    _
  %s11 = ssub.s32 1, %s9
  %s12 = scalar_select 0, %s11, %s9
  $region1: #{tpu_custom_call.1} parent=0
    #allocation2 [shape = 'u8[32768]{0}', space=vmem, size = 0x8000, scoped, tag = 'input window, operand 0']
    #allocation3 [shape = 's32[2]{0}', space=sflag, size = 0x8, scoped, tag = 'scoped memory for tpu_custom_call.1']
    #allocation4 [shape = 's32[2]{0}', space=sflag, size = 0x8, scoped, tag = 'scoped memory for tpu_custom_call.1']
    #allocation5 [shape = 'u8[32768]{0}', space=vmem, size = 0x8000, scoped, tag = 'input window, operand 1']
    #allocation6 [shape = 's32[2]{0}', space=sflag, size = 0x8, scoped, tag = 'scoped memory for tpu_custom_call.1']
    #allocation7 [shape = 'u8[32768]{0}', space=vmem, size = 0x8000, scoped, tag = 'input window, operand 2, single buffered']
    #allocation8 [shape = 'u8[32768]{0}', space=vmem, size = 0x8000, scoped, tag = 'input window, operand 3, single buffered']
    #allocation9 [shape = 's32[1]{0}', space=sflag, size = 0x4, scoped, tag = 'scoped memory for tpu_custom_call.1']
    #allocation10 [shape = 'u8[32768]{0}', space=vmem, size = 0x8000, scoped, tag = 'input window, operand 4, single buffered']
    #allocation11 [shape = 'u8[32768]{0}', space=vmem, size = 0x8000, scoped, tag = 'input window, operand 5, single buffered']
    #allocation12 [shape = 's32[1]{0}', space=sflag, size = 0x4, scoped, tag = 'scoped memory for tpu_custom_call.1']
    #allocation13 [shape = 'u8[32768]{0}', space=vmem, size = 0x8000, scoped, tag = 'input window, operand 6, single buffered']
    #allocation14 [shape = 'u8[32768]{0}', space=vmem, size = 0x8000, scoped, tag = 'input window, operand 7, single buffered']
    #allocation15 [shape = 's32[1]{0}', space=sflag, size = 0x4, scoped, tag = 'scoped memory for tpu_custom_call.1']
    #allocation16 [shape = 'u8[65536]{0}', space=vmem, size = 0x10000, scoped, tag = 'output window, operand 0']
    %13 = vsyncpa [#allocation3], 0
    %s14 = scalar_lea.sflag [#allocation3], 1
    %15 = vsyncpa %s14, 0
    %16 = vsyncpa [#allocation6], 0
    %s17 = scalar_lea.sflag [#allocation6], 1
    %18 = vsyncpa %s17, 0
    %19 = vsyncpa [#allocation9], 0
    %20 = vsyncpa [#allocation12], 0
    %21 = vsyncpa [#allocation15], 0
    %22 = vsyncpa [#allocation4], 0
    %s23 = scalar_lea.sflag [#allocation4], 1
    %24 = vsyncpa %s23, 0
    loop: start=0, step=1, limit=6
    $region2: #{tpu_custom_call.1} parent=1 // loop_pre_header
      _
    $region3: #{tpu_custom_call.1} parent=1 // loop_header
      %s26 = sphi 0, %s30
      %p27 = scmp.ge.s32.totalorder %s26, 6
      %s36 = sphi 0, %s38
      %s39 = sphi 0, %s36
      %s40 = sphi 0, %s39
      %s56 = sphi 0, %s40
      %s62 = sphi 0, %s64
      %s65 = sphi 0, %s62
      %s66 = sphi 0, %s65
      %s82 = sphi 0, %s66
      %s86 = sphi 0, %s86
      %s88 = sphi 0, %s86
      %s89 = sphi 0, %s88
      %s103 = sphi 0, %s89
      %s107 = sphi 0, %s107
      %s109 = sphi 0, %s107
      %s110 = sphi 0, %s109
      %s124 = sphi 0, %s110
      %s128 = sphi 0, %s128
      %s130 = sphi 0, %s128
      %s131 = sphi 0, %s130
      %s145 = sphi 0, %s131
      %s149 = sphi 0, %s149
      %s151 = sphi 0, %s149
      %s152 = sphi 0, %s151
      %s166 = sphi 0, %s152
      %s170 = sphi 0, %s170
      %s172 = sphi 0, %s170
      %s173 = sphi 0, %s172
      %s187 = sphi 0, %s173
      %s191 = sphi 0, %s191
      %s193 = sphi 0, %s191
      %s194 = sphi 0, %s193
      %s208 = sphi 0, %s194
      %s214 = sphi 0, %s216
      %s217 = sphi 0, %s214
      %s218 = sphi 0, %s217
      %s234 = sphi 0, %s218
    $region4: #{tpu_custom_call.1} parent=1 // loop_header_branch
      %29 = sbr.rel (%p27) target = $region8
    $region5: #{tpu_custom_call.1} parent=1 // loop_body
      %s31 = ssub.s32 %s26, 1
      %s32 = ssub.s32 %s26, 2
      %s33 = sadd.s32 %s26, 1
      %s34 = ssub.s32 %s26, %s33
      %p35 = scmp.eq.s32.totalorder %s34, 0
      %s37 = sadd.s32 %s36, 1
      %s38 = scalar_select %p35, %s36, %s37
      %p41 = pneg %p35
      %p42 = scmp.eq.s32.totalorder %s26, 3
      %p43 = por %p41, %p42
      %p44 = scmp.ne.s32.totalorder %s36, %s39
      %p45 = scmp.eq.s32.totalorder %s26, 0
      %p46 = por %p44, %p45
      %p47 = scmp.ne.s32.totalorder %s36, %s39
      %p48 = scmp.eq.s32.totalorder %s31, 3
      %p49 = por %p47, %p48
      %p50 = scmp.ne.s32.totalorder %s39, %s40
      %p51 = scmp.eq.s32.totalorder %s31, 0
      %p52 = por %p50, %p51
      %p53 = scmp.ne.s32.totalorder %s39, %s40
      %p54 = scmp.eq.s32.totalorder %s32, 3
      %p55 = por %p53, %p54
      %p57 = scmp.ne.s32.totalorder %s40, %s56
      %p58 = scmp.eq.s32.totalorder %s32, 0
      %p59 = por %p57, %p58
      %s60 = ssub.s32 %s26, %s33
      %p61 = scmp.eq.s32.totalorder %s60, 0
      %s63 = sadd.s32 %s62, 1
      %s64 = scalar_select %p61, %s62, %s63
      %p67 = pneg %p61
      %p68 = scmp.eq.s32.totalorder %s26, 3
      %p69 = por %p67, %p68
      %p70 = scmp.ne.s32.totalorder %s62, %s65
      %p71 = scmp.eq.s32.totalorder %s26, 0
      %p72 = por %p70, %p71
      %p73 = scmp.ne.s32.totalorder %s62, %s65
      %p74 = scmp.eq.s32.totalorder %s31, 3
      %p75 = por %p73, %p74
      %p76 = scmp.ne.s32.totalorder %s65, %s66
      %p77 = scmp.eq.s32.totalorder %s31, 0
      %p78 = por %p76, %p77
      %p79 = scmp.ne.s32.totalorder %s65, %s66
      %p80 = scmp.eq.s32.totalorder %s32, 3
      %p81 = por %p79, %p80
      %p83 = scmp.ne.s32.totalorder %s66, %s82
      %p84 = scmp.eq.s32.totalorder %s32, 0
      %p85 = por %p83, %p84
      %s87 = sadd.s32 %s86, 1
      %p90 = scmp.eq.s32.totalorder %s26, 3
      %p91 = scmp.ne.s32.totalorder %s86, %s88
      %p92 = scmp.eq.s32.totalorder %s26, 0
      %p93 = por %p91, %p92
      %p94 = scmp.ne.s32.totalorder %s86, %s88
      %p95 = scmp.eq.s32.totalorder %s31, 3
      %p96 = por %p94, %p95
      %p97 = scmp.ne.s32.totalorder %s88, %s89
      %p98 = scmp.eq.s32.totalorder %s31, 0
      %p99 = por %p97, %p98
      %p100 = scmp.ne.s32.totalorder %s88, %s89
      %p101 = scmp.eq.s32.totalorder %s32, 3
      %p102 = por %p100, %p101
      %p104 = scmp.ne.s32.totalorder %s89, %s103
      %p105 = scmp.eq.s32.totalorder %s32, 0
      %p106 = por %p104, %p105
      %s108 = sadd.s32 %s107, 1
      %p111 = scmp.eq.s32.totalorder %s26, 3
      %p112 = scmp.ne.s32.totalorder %s107, %s109
      %p113 = scmp.eq.s32.totalorder %s26, 0
      %p114 = por %p112, %p113
      %p115 = scmp.ne.s32.totalorder %s107, %s109
      %p116 = scmp.eq.s32.totalorder %s31, 3
      %p117 = por %p115, %p116
      %p118 = scmp.ne.s32.totalorder %s109, %s110
      %p119 = scmp.eq.s32.totalorder %s31, 0
      %p120 = por %p118, %p119
      %p121 = scmp.ne.s32.totalorder %s109, %s110
      %p122 = scmp.eq.s32.totalorder %s32, 3
      %p123 = por %p121, %p122
      %p125 = scmp.ne.s32.totalorder %s110, %s124
      %p126 = scmp.eq.s32.totalorder %s32, 0
      %p127 = por %p125, %p126
      %s129 = sadd.s32 %s128, 1
      %p132 = scmp.eq.s32.totalorder %s26, 3
      %p133 = scmp.ne.s32.totalorder %s128, %s130
      %p134 = scmp.eq.s32.totalorder %s26, 0
      %p135 = por %p133, %p134
      %p136 = scmp.ne.s32.totalorder %s128, %s130
      %p137 = scmp.eq.s32.totalorder %s31, 3
      %p138 = por %p136, %p137
      %p139 = scmp.ne.s32.totalorder %s130, %s131
      %p140 = scmp.eq.s32.totalorder %s31, 0
      %p141 = por %p139, %p140
      %p142 = scmp.ne.s32.totalorder %s130, %s131
      %p143 = scmp.eq.s32.totalorder %s32, 3
      %p144 = por %p142, %p143
      %p146 = scmp.ne.s32.totalorder %s131, %s145
      %p147 = scmp.eq.s32.totalorder %s32, 0
      %p148 = por %p146, %p147
      %s150 = sadd.s32 %s149, 1
      %p153 = scmp.eq.s32.totalorder %s26, 3
      %p154 = scmp.ne.s32.totalorder %s149, %s151
      %p155 = scmp.eq.s32.totalorder %s26, 0
      %p156 = por %p154, %p155
      %p157 = scmp.ne.s32.totalorder %s149, %s151
      %p158 = scmp.eq.s32.totalorder %s31, 3
      %p159 = por %p157, %p158
      %p160 = scmp.ne.s32.totalorder %s151, %s152
      %p161 = scmp.eq.s32.totalorder %s31, 0
      %p162 = por %p160, %p161
      %p163 = scmp.ne.s32.totalorder %s151, %s152
      %p164 = scmp.eq.s32.totalorder %s32, 3
      %p165 = por %p163, %p164
      %p167 = scmp.ne.s32.totalorder %s152, %s166
      %p168 = scmp.eq.s32.totalorder %s32, 0
      %p169 = por %p167, %p168
      %s171 = sadd.s32 %s170, 1
      %p174 = scmp.eq.s32.totalorder %s26, 3
      %p175 = scmp.ne.s32.totalorder %s170, %s172
      %p176 = scmp.eq.s32.totalorder %s26, 0
      %p177 = por %p175, %p176
      %p178 = scmp.ne.s32.totalorder %s170, %s172
      %p179 = scmp.eq.s32.totalorder %s31, 3
      %p180 = por %p178, %p179
      %p181 = scmp.ne.s32.totalorder %s172, %s173
      %p182 = scmp.eq.s32.totalorder %s31, 0
      %p183 = por %p181, %p182
      %p184 = scmp.ne.s32.totalorder %s172, %s173
      %p185 = scmp.eq.s32.totalorder %s32, 3
      %p186 = por %p184, %p185
      %p188 = scmp.ne.s32.totalorder %s173, %s187
      %p189 = scmp.eq.s32.totalorder %s32, 0
      %p190 = por %p188, %p189
      %s192 = sadd.s32 %s191, 1
      %p195 = scmp.eq.s32.totalorder %s26, 3
      %p196 = scmp.ne.s32.totalorder %s191, %s193
      %p197 = scmp.eq.s32.totalorder %s26, 0
      %p198 = por %p196, %p197
      %p199 = scmp.ne.s32.totalorder %s191, %s193
      %p200 = scmp.eq.s32.totalorder %s31, 3
      %p201 = por %p199, %p200
      %p202 = scmp.ne.s32.totalorder %s193, %s194
      %p203 = scmp.eq.s32.totalorder %s31, 0
      %p204 = por %p202, %p203
      %p205 = scmp.ne.s32.totalorder %s193, %s194
      %p206 = scmp.eq.s32.totalorder %s32, 3
      %p207 = por %p205, %p206
      %p209 = scmp.ne.s32.totalorder %s194, %s208
      %p210 = scmp.eq.s32.totalorder %s32, 0
      %p211 = por %p209, %p210
      %s212 = ssub.s32 %s26, %s33
      %p213 = scmp.eq.s32.totalorder %s212, 0
      %s215 = sadd.s32 %s214, 1
      %s216 = scalar_select %p213, %s214, %s215
      %p219 = pneg %p213
      %p220 = scmp.eq.s32.totalorder %s26, 3
      %p221 = por %p219, %p220
      %p222 = scmp.ne.s32.totalorder %s214, %s217
      %p223 = scmp.eq.s32.totalorder %s26, 0
      %p224 = por %p222, %p223
      %p225 = scmp.ne.s32.totalorder %s214, %s217
      %p226 = scmp.eq.s32.totalorder %s31, 3
      %p227 = por %p225, %p226
      %p228 = scmp.ne.s32.totalorder %s217, %s218
      %p229 = scmp.eq.s32.totalorder %s31, 0
      %p230 = por %p228, %p229
      %p231 = scmp.ne.s32.totalorder %s217, %s218
      %p232 = scmp.eq.s32.totalorder %s32, 3
      %p233 = por %p231, %p232
      %p235 = scmp.ne.s32.totalorder %s218, %s234
      %p236 = scmp.eq.s32.totalorder %s32, 0
      %p237 = por %p235, %p236
      %p238 = scmp.le.s32.totalorder 1, %s26
      %p239 = scmp.lt.s32.totalorder %s26, 5
      %p240 = pnand %p238, %p239
      %p241 = pneg %p240
      // Predicated region
      $region9: #{tpu_custom_call.1} parent=5 // pred_check
        _
      $region10: #{tpu_custom_call.1} parent=5 // pred_check_branch
        %243 = sbr.rel (%p240) target = $region12
      $region11: #{tpu_custom_call.1} parent=5 // pred_region
        %s244 = ssub.s32 %s26, 1
        // Predicated region
        $region13: #{tpu_custom_call.1} parent=11 // pred_check
          %p245 = pneg %p99
        $region14: #{tpu_custom_call.1} parent=11 // pred_check_branch
          %247 = sbr.rel (%p245) target = $region16
        $region15: #{tpu_custom_call.1} parent=11 // pred_region
          %s249 = ssub.s32 1024, 1024
          %250 = vsyncadd [#allocation6], %s249
          %s251 = sshll.u32 [#allocation7], 4
          %s252 = int_to_ptr.vmem [resolvable:$true] %s251
          %257 = dma.hbm_to_vmem [thread:$0]  %s2, 1024, %s252, [#allocation6], 64, 64, 4
        $region16: #{tpu_custom_call.1} parent=11 // pred_fallthru
          _
        // Predicated region
        $region17: #{tpu_custom_call.1} parent=11 // pred_check
          %p258 = pneg %p120
        $region18: #{tpu_custom_call.1} parent=11 // pred_check_branch
          %260 = sbr.rel (%p258) target = $region20
        $region19: #{tpu_custom_call.1} parent=11 // pred_region
          %s262 = ssub.s32 1024, 1024
          %263 = vsyncadd [#allocation9], %s262
          %s264 = sshll.u32 [#allocation8], 4
          %s265 = int_to_ptr.vmem [resolvable:$true] %s264
          %270 = dma.hbm_to_vmem [thread:$0]  %s3, 1024, %s265, [#allocation9], 64, 64, 4
        $region20: #{tpu_custom_call.1} parent=11 // pred_fallthru
          _
        // Predicated region
        $region21: #{tpu_custom_call.1} parent=11 // pred_check
          %p271 = pneg %p141
        $region22: #{tpu_custom_call.1} parent=11 // pred_check_branch
          %273 = sbr.rel (%p271) target = $region24
        $region23: #{tpu_custom_call.1} parent=11 // pred_region
          %s275 = ssub.s32 1024, 1024
          %276 = vsyncadd [#allocation9], %s275
          %s277 = sshll.u32 [#allocation10], 4
          %s278 = int_to_ptr.vmem [resolvable:$true] %s277
          %283 = dma.hbm_to_vmem [thread:$0]  %s4, 1024, %s278, [#allocation9], 64, 64, 4
        $region24: #{tpu_custom_call.1} parent=11 // pred_fallthru
          _
        // Predicated region
        $region25: #{tpu_custom_call.1} parent=11 // pred_check
          %p284 = pneg %p162
        $region26: #{tpu_custom_call.1} parent=11 // pred_check_branch
          %286 = sbr.rel (%p284) target = $region28
        $region27: #{tpu_custom_call.1} parent=11 // pred_region
          %s288 = ssub.s32 1024, 1024
          %289 = vsyncadd [#allocation12], %s288
          %s290 = sshll.u32 [#allocation11], 4
          %s291 = int_to_ptr.vmem [resolvable:$true] %s290
          %296 = dma.hbm_to_vmem [thread:$0]  %s5, 1024, %s291, [#allocation12], 64, 64, 4
        $region28: #{tpu_custom_call.1} parent=11 // pred_fallthru
          _
        // Predicated region
        $region29: #{tpu_custom_call.1} parent=11 // pred_check
          %p297 = pneg %p183
        $region30: #{tpu_custom_call.1} parent=11 // pred_check_branch
          %299 = sbr.rel (%p297) target = $region32
        $region31: #{tpu_custom_call.1} parent=11 // pred_region
          %s301 = ssub.s32 1024, 1024
          %302 = vsyncadd [#allocation12], %s301
          %s303 = sshll.u32 [#allocation13], 4
          %s304 = int_to_ptr.vmem [resolvable:$true] %s303
          %309 = dma.hbm_to_vmem [thread:$0]  %s6, 1024, %s304, [#allocation12], 64, 64, 4
        $region32: #{tpu_custom_call.1} parent=11 // pred_fallthru
          _
        // Predicated region
        $region33: #{tpu_custom_call.1} parent=11 // pred_check
          %p310 = pneg %p204
        $region34: #{tpu_custom_call.1} parent=11 // pred_check_branch
          %312 = sbr.rel (%p310) target = $region36
        $region35: #{tpu_custom_call.1} parent=11 // pred_region
          %s314 = ssub.s32 1024, 1024
          %315 = vsyncadd [#allocation15], %s314
          %s316 = sshll.u32 [#allocation14], 4
          %s317 = int_to_ptr.vmem [resolvable:$true] %s316
          %322 = dma.hbm_to_vmem [thread:$0]  %s7, 1024, %s317, [#allocation15], 64, 64, 4
        $region36: #{tpu_custom_call.1} parent=11 // pred_fallthru
          _
      $region12: #{tpu_custom_call.1} parent=5 // pred_fallthru
        _
      %p323 = scmp.lt.s32.totalorder %s26, 4
      // Predicated region
      $region37: #{tpu_custom_call.1} parent=5 // pred_check
        %p324 = pneg %p323
      $region38: #{tpu_custom_call.1} parent=5 // pred_check_branch
        %326 = sbr.rel (%p324) target = $region40
      $region39: #{tpu_custom_call.1} parent=5 // pred_region
        // Predicated region
        $region41: #{tpu_custom_call.1} parent=39 // pred_check
          %p327 = pneg %p46
        $region42: #{tpu_custom_call.1} parent=39 // pred_check_branch
          %329 = sbr.rel (%p327) target = $region44
        $region43: #{tpu_custom_call.1} parent=39 // pred_region
          %s330 = sand.u32 %s36, 1
          %s331 = scalar_lea.sflag [#allocation3], %s330
          %s332 = sand.u32 %s36, 1
          %s333 = smul.addr %s332, 32
          %s334 = scalar_lea.vmem [#allocation2], %s333
          %s336 = ssub.s32 512, 512
          %337 = vsyncadd %s331, %s336
          %s338 = smul.addr %s26, 8
          %s339 = smul.addr %s338, 64
          %s340 = scalar_lea.hbm %s0, %s339
          %s341 = sshll.u32 %s334, 4
          %s342 = int_to_ptr.vmem [resolvable:$true] %s341
          %347 = dma.hbm_to_vmem [thread:$0]  %s340, 512, %s342, %s331, 64, 64, 4
        $region44: #{tpu_custom_call.1} parent=39 // pred_fallthru
          _
        // Predicated region
        $region45: #{tpu_custom_call.1} parent=39 // pred_check
          %p348 = pneg %p72
        $region46: #{tpu_custom_call.1} parent=39 // pred_check_branch
          %350 = sbr.rel (%p348) target = $region48
        $region47: #{tpu_custom_call.1} parent=39 // pred_region
          %s351 = sand.u32 %s26, 1
          %s352 = scalar_lea.sflag [#allocation6], %s351
          %s353 = sand.u32 %s62, 1
          %s354 = smul.addr %s353, 32
          %s355 = scalar_lea.vmem [#allocation5], %s354
          %s357 = ssub.s32 512, 512
          %358 = vsyncadd %s352, %s357
          %s359 = smul.addr %s26, 8
          %s360 = smul.addr %s359, 64
          %s361 = scalar_lea.hbm %s1, %s360
          %s362 = sshll.u32 %s355, 4
          %s363 = int_to_ptr.vmem [resolvable:$true] %s362
          %368 = dma.hbm_to_vmem [thread:$0]  %s361, 512, %s363, %s352, 64, 64, 4
        $region48: #{tpu_custom_call.1} parent=39 // pred_fallthru
          _
      $region40: #{tpu_custom_call.1} parent=5 // pred_fallthru
        _
      %p369 = scmp.le.s32.totalorder 1, %s26
      %p370 = scmp.lt.s32.totalorder %s26, 5
      %p371 = pnand %p369, %p370
      %p372 = pneg %p371
      // Predicated region
      $region49: #{tpu_custom_call.1} parent=5 // pred_check
        _
      $region50: #{tpu_custom_call.1} parent=5 // pred_check_branch
        %374 = sbr.rel (%p371) target = $region52
      $region51: #{tpu_custom_call.1} parent=5 // pred_region
        %s375 = ssub.s32 %s26, 1
        %s376 = sand.u32 %s39, 1
        %s377 = scalar_lea.sflag [#allocation3], %s376
        %s378 = sand.u32 %s39, 1
        %s379 = smul.addr %s378, 32
        %s380 = scalar_lea.vmem [#allocation2], %s379
        // Predicated region
        $region53: #{tpu_custom_call.1} parent=51 // pred_check
          %p381 = pneg %p52
        $region54: #{tpu_custom_call.1} parent=51 // pred_check_branch
          %383 = sbr.rel (%p381) target = $region56
        $region55: #{tpu_custom_call.1} parent=51 // pred_region
          %384 = dma.done %s377, 512
        $region56: #{tpu_custom_call.1} parent=51 // pred_fallthru
          _
        %s385 = sand.u32 %s31, 1
        %s386 = scalar_lea.sflag [#allocation6], %s385
        %s387 = sand.u32 %s65, 1
        %s388 = smul.addr %s387, 32
        %s389 = scalar_lea.vmem [#allocation5], %s388
        // Predicated region
        $region57: #{tpu_custom_call.1} parent=51 // pred_check
          %p390 = pneg %p78
        $region58: #{tpu_custom_call.1} parent=51 // pred_check_branch
          %392 = sbr.rel (%p390) target = $region60
        $region59: #{tpu_custom_call.1} parent=51 // pred_region
          %393 = dma.done %s386, 512
        $region60: #{tpu_custom_call.1} parent=51 // pred_fallthru
          _
        // Predicated region
        $region61: #{tpu_custom_call.1} parent=51 // pred_check
          %p394 = pneg %p99
        $region62: #{tpu_custom_call.1} parent=51 // pred_check_branch
          %396 = sbr.rel (%p394) target = $region64
        $region63: #{tpu_custom_call.1} parent=51 // pred_region
          %397 = dma.done [#allocation6], 1024
        $region64: #{tpu_custom_call.1} parent=51 // pred_fallthru
          _
        // Predicated region
        $region65: #{tpu_custom_call.1} parent=51 // pred_check
          %p398 = pneg %p120
        $region66: #{tpu_custom_call.1} parent=51 // pred_check_branch
          %400 = sbr.rel (%p398) target = $region68
        $region67: #{tpu_custom_call.1} parent=51 // pred_region
          %401 = dma.done [#allocation9], 1024
        $region68: #{tpu_custom_call.1} parent=51 // pred_fallthru
          _
        // Predicated region
        $region69: #{tpu_custom_call.1} parent=51 // pred_check
          %p402 = pneg %p141
        $region70: #{tpu_custom_call.1} parent=51 // pred_check_branch
          %404 = sbr.rel (%p402) target = $region72
        $region71: #{tpu_custom_call.1} parent=51 // pred_region
          %405 = dma.done [#allocation9], 1024
        $region72: #{tpu_custom_call.1} parent=51 // pred_fallthru
          _
        // Predicated region
        $region73: #{tpu_custom_call.1} parent=51 // pred_check
          %p406 = pneg %p162
        $region74: #{tpu_custom_call.1} parent=51 // pred_check_branch
          %408 = sbr.rel (%p406) target = $region76
        $region75: #{tpu_custom_call.1} parent=51 // pred_region
          %409 = dma.done [#allocation12], 1024
        $region76: #{tpu_custom_call.1} parent=51 // pred_fallthru
          _
        // Predicated region
        $region77: #{tpu_custom_call.1} parent=51 // pred_check
          %p410 = pneg %p183
        $region78: #{tpu_custom_call.1} parent=51 // pred_check_branch
          %412 = sbr.rel (%p410) target = $region80
        $region79: #{tpu_custom_call.1} parent=51 // pred_region
          %413 = dma.done [#allocation12], 1024
        $region80: #{tpu_custom_call.1} parent=51 // pred_fallthru
          _
        // Predicated region
        $region81: #{tpu_custom_call.1} parent=51 // pred_check
          %p414 = pneg %p204
        $region82: #{tpu_custom_call.1} parent=51 // pred_check_branch
          %416 = sbr.rel (%p414) target = $region84
        $region83: #{tpu_custom_call.1} parent=51 // pred_region
          %417 = dma.done [#allocation15], 1024
        $region84: #{tpu_custom_call.1} parent=51 // pred_fallthru
          _
        %s418 = sand.u32 %s39, 1
        %s419 = scalar_lea.sflag [#allocation3], %s418
        %s420 = sand.u32 %s39, 1
        %s421 = smul.addr %s420, 32
        %s422 = scalar_lea.vmem [#allocation2], %s421
        %p423 = pneg %p52
        %p424 = pneg %p49
        %s425 = sand.u32 %s31, 1
        %s426 = scalar_lea.sflag [#allocation6], %s425
        %s427 = sand.u32 %s65, 1
        %s428 = smul.addr %s427, 32
        %s429 = scalar_lea.vmem [#allocation5], %s428
        %p430 = pneg %p78
        %p431 = pneg %p75
        %p432 = pneg %p99
        %p433 = pneg %p96
        %p434 = pneg %p120
        %p435 = pneg %p117
        %p436 = pneg %p141
        %p437 = pneg %p138
        %p438 = pneg %p162
        %p439 = pneg %p159
        %p440 = pneg %p183
        %p441 = pneg %p180
        %p442 = pneg %p204
        %p443 = pneg %p201
        %p444 = pneg %p230
        %p445 = pneg %p227
        %s446 = sand.u32 %s217, 1
        %s447 = scalar_lea.sflag [#allocation4], %s446
        %s448 = sand.u32 %s217, 1
        %s449 = smul.addr %s448, 64
        %s450 = scalar_lea.vmem [#allocation16], %s449
        %v452 = vld [vmem:[%s380] sm:$0xf]
        %v453 = vld [vmem:[%s380 + $0x4] sm:$0xf]
        %v454 = vld [vmem:[%s380 + $0x8] sm:$0xf]
        %v455 = vld [vmem:[%s380 + $0xc] sm:$0xf]
        %v456 = vld [vmem:[%s380 + $0x10] sm:$0xf]
        %v457 = vld [vmem:[%s380 + $0x14] sm:$0xf]
        %v458 = vld [vmem:[%s380 + $0x18] sm:$0xf]
        %v459 = vld [vmem:[%s380 + $0x1c] sm:$0xf]
        %v460 = vld [vmem:[%s389] sm:$0xf]
        %v461 = vld [vmem:[%s389 + $0x4] sm:$0xf]
        %v462 = vld [vmem:[%s389 + $0x8] sm:$0xf]
        %v463 = vld [vmem:[%s389 + $0xc] sm:$0xf]
        %v464 = vld [vmem:[%s389 + $0x10] sm:$0xf]
        %v465 = vld [vmem:[%s389 + $0x14] sm:$0xf]
        %v466 = vld [vmem:[%s389 + $0x18] sm:$0xf]
        %v467 = vld [vmem:[%s389 + $0x1c] sm:$0xf]
        %v476 = vunpack.c.l.b16 %v452
        %v477 = vunpack.c.l.b16 %v453
        %v478 = vunpack.c.l.b16 %v454
        %v479 = vunpack.c.l.b16 %v455
        %v480 = vunpack.c.l.b16 %v456
        %v481 = vunpack.c.l.b16 %v457
        %v482 = vunpack.c.l.b16 %v458
        %v483 = vunpack.c.l.b16 %v459
        %v484 = vpack.c.b16 %v477, %v476
        %v485 = vpack.c.b16 %v479, %v478
        %v486 = vpack.c.b16 %v481, %v480
        %v487 = vpack.c.b16 %v483, %v482
        %v496 = vunpack.c.l.b16 %v460
        %v497 = vunpack.c.l.b16 %v461
        %v498 = vunpack.c.l.b16 %v462
        %v499 = vunpack.c.l.b16 %v463
        %v500 = vunpack.c.l.b16 %v464
        %v501 = vunpack.c.l.b16 %v465
        %v502 = vunpack.c.l.b16 %v466
        %v503 = vunpack.c.l.b16 %v467
        %v504 = vpack.c.b16 %v497, %v496
        %v505 = vpack.c.b16 %v499, %v498
        %v506 = vpack.c.b16 %v501, %v500
        %v507 = vpack.c.b16 %v503, %v502
        %vm512 = vcmask 523264
        %v514 = vsel %vm512, %v484, 0
        %v517 = vsel %vm512, %v485, 0
        %v520 = vsel %vm512, %v486, 0
        %v523 = vsel %vm512, %v487, 0
        %525 = vmatprep.subr.bf16.mxu0 0
        %526 = vmatpush1.bf16.msra.mxu0 0
        %527 = vmatprep.subr.bf16.mxu0 0
        %528 = vmatpush1.bf16.msra.mxu0 0
        %529 = vmatprep.subr.bf16.mxu0 0
        %530 = vmatpush1.bf16.msra.mxu0 0
        %531 = vmatprep.subr.bf16.mxu0 0
        %532 = vmatpush1.bf16.msra.mxu0 0
        %533 = vmatprep.subr.bf16.mxu0 0
        %534 = vmatpush1.bf16.msra.mxu0 %v507
        %535 = vmatprep.subr.bf16.mxu0 0
        %536 = vmatpush1.bf16.msra.mxu0 %v506
        %537 = vmatprep.subr.bf16.mxu0 0
        %538 = vmatpush1.bf16.msra.mxu0 %v505
        %539 = vmatprep.subr.bf16.mxu0 0
        %540 = vmatpush1.bf16.msra.mxu0 %v504
        %541 = vmatprep.subr.bf16.mxu0 0
        %542 = vmatpush2.bf16.msra.mxu0 0
        %543 = vmatprep.subr.bf16.mxu0 0
        %544 = vmatpush2.bf16.msra.mxu0 0
        %545 = vmatprep.subr.bf16.mxu0 0
        %546 = vmatpush2.bf16.msra.mxu0 0
        %547 = vmatprep.subr.bf16.mxu0 0
        %548 = vmatpush2.bf16.msra.mxu0 0
        %549 = vmatprep.subr.bf16.mxu0 0
        %550 = vmatpush2.bf16.msra.mxu0 0
        %551 = vmatprep.subr.bf16.mxu0 0
        %552 = vmatpush2.bf16.msra.mxu0 0
        %553 = vmatprep.subr.bf16.mxu0 0
        %554 = vmatpush2.bf16.msra.mxu0 0
        %555 = vmatprep.subr.bf16.mxu0 0
        %556 = vmatpush2.bf16.msra.mxu0 0
        %557 = vmatprep.mubr.bf16.mxu0 0
        %558 = vmatmul.mubr.bf16.gmra.mxu0 %v514
        %v559 = vpop.f32.mrf.mxu0
        %v560 = vadd.f32 0.0, %v559
        %v561 = vpop.f32.mrf.mxu0
        %v562 = vpop.f32.mrf.mxu0
        %v563 = vadd.f32 0.0, %v562
        %v564 = vpop.f32.mrf.mxu0
        %565 = vmatprep.mubr.bf16.mxu0 0
        %566 = vmatmul.mubr.bf16.gmra.mxu0 %v517
        %v567 = vpop.f32.mrf.mxu0
        %v568 = vadd.f32 0.0, %v567
        %v569 = vpop.f32.mrf.mxu0
        %v570 = vpop.f32.mrf.mxu0
        %v571 = vadd.f32 0.0, %v570
        %v572 = vpop.f32.mrf.mxu0
        %573 = vmatprep.mubr.bf16.mxu0 0
        %574 = vmatmul.mubr.bf16.gmra.mxu0 %v520
        %v575 = vpop.f32.mrf.mxu0
        %v576 = vadd.f32 0.0, %v575
        %v577 = vpop.f32.mrf.mxu0
        %v578 = vpop.f32.mrf.mxu0
        %v579 = vadd.f32 0.0, %v578
        %v580 = vpop.f32.mrf.mxu0
        %581 = vmatprep.mubr.bf16.mxu0 0
        %582 = vmatmul.mubr.bf16.gmra.mxu0 %v523
        %v583 = vpop.f32.mrf.mxu0
        %v584 = vadd.f32 0.0, %v583
        %v585 = vpop.f32.mrf.mxu0
        %v586 = vpop.f32.mrf.mxu0
        %v587 = vadd.f32 0.0, %v586
        %v588 = vpop.f32.mrf.mxu0
        %589 = vdwg.mxu0
        %v590 = vld [vmem:[#allocation7] sm:$0xf]
        %v591 = vld [vmem:[#allocation7 + $0x4] sm:$0xf]
        %v592 = vld [vmem:[#allocation7 + $0x8] sm:$0xf]
        %v593 = vld [vmem:[#allocation7 + $0xc] sm:$0xf]
        %v594 = vld [vmem:[#allocation7 + $0x10] sm:$0xf]
        %v595 = vld [vmem:[#allocation7 + $0x14] sm:$0xf]
        %v596 = vld [vmem:[#allocation7 + $0x18] sm:$0xf]
        %v597 = vld [vmem:[#allocation7 + $0x1c] sm:$0xf]
        %v598 = vld [vmem:[#allocation7 + $0x20] sm:$0xf]
        %v599 = vld [vmem:[#allocation7 + $0x24] sm:$0xf]
        %v600 = vld [vmem:[#allocation7 + $0x28] sm:$0xf]
        %v601 = vld [vmem:[#allocation7 + $0x2c] sm:$0xf]
        %v602 = vld [vmem:[#allocation7 + $0x30] sm:$0xf]
        %v603 = vld [vmem:[#allocation7 + $0x34] sm:$0xf]
        %v604 = vld [vmem:[#allocation7 + $0x38] sm:$0xf]
        %v605 = vld [vmem:[#allocation7 + $0x3c] sm:$0xf]
        %v606 = vld [vmem:[#allocation8] sm:$0xf]
        %v607 = vld [vmem:[#allocation8 + $0x4] sm:$0xf]
        %v608 = vld [vmem:[#allocation8 + $0x8] sm:$0xf]
        %v609 = vld [vmem:[#allocation8 + $0xc] sm:$0xf]
        %v610 = vld [vmem:[#allocation8 + $0x10] sm:$0xf]
        %v611 = vld [vmem:[#allocation8 + $0x14] sm:$0xf]
        %v612 = vld [vmem:[#allocation8 + $0x18] sm:$0xf]
        %v613 = vld [vmem:[#allocation8 + $0x1c] sm:$0xf]
        %v614 = vld [vmem:[#allocation8 + $0x20] sm:$0xf]
        %v615 = vld [vmem:[#allocation8 + $0x24] sm:$0xf]
        %v616 = vld [vmem:[#allocation8 + $0x28] sm:$0xf]
        %v617 = vld [vmem:[#allocation8 + $0x2c] sm:$0xf]
        %v618 = vld [vmem:[#allocation8 + $0x30] sm:$0xf]
        %v619 = vld [vmem:[#allocation8 + $0x34] sm:$0xf]
        %v620 = vld [vmem:[#allocation8 + $0x38] sm:$0xf]
        %v621 = vld [vmem:[#allocation8 + $0x3c] sm:$0xf]
        %v622 = vpack.c.bf16 %v563, %v560
        %v623 = vpack.c.bf16 %v571, %v568
        %v624 = vpack.c.bf16 %v579, %v576
        %v625 = vpack.c.bf16 %v587, %v584
        %v642 = vunpack.c.l.b16 %v606
        %v643 = vunpack.c.l.b16 %v607
        %v644 = vunpack.c.l.b16 %v608
        %v645 = vunpack.c.l.b16 %v609
        %v646 = vunpack.c.l.b16 %v610
        %v647 = vunpack.c.l.b16 %v611
        %v648 = vunpack.c.l.b16 %v612
        %v649 = vunpack.c.l.b16 %v613
        %v650 = vunpack.c.l.b16 %v614
        %v651 = vunpack.c.l.b16 %v615
        %v652 = vunpack.c.l.b16 %v616
        %v653 = vunpack.c.l.b16 %v617
        %v654 = vunpack.c.l.b16 %v618
        %v655 = vunpack.c.l.b16 %v619
        %v656 = vunpack.c.l.b16 %v620
        %v657 = vunpack.c.l.b16 %v621
        %v658 = vpack.c.b16 %v643, %v642
        %v659 = vpack.c.b16 %v645, %v644
        %v660 = vpack.c.b16 %v647, %v646
        %v661 = vpack.c.b16 %v649, %v648
        %v662 = vpack.c.b16 %v651, %v650
        %v663 = vpack.c.b16 %v653, %v652
        %v664 = vpack.c.b16 %v655, %v654
        %v665 = vpack.c.b16 %v657, %v656
        %674 = vmatprep.subr.bf16.mxu0 0
        %675 = vmatpush1.bf16.msra.mxu0 %v665
        %676 = vmatprep.subr.bf16.mxu0 0
        %677 = vmatpush1.bf16.msra.mxu0 %v664
        %678 = vmatprep.subr.bf16.mxu0 0
        %679 = vmatpush1.bf16.msra.mxu0 %v663
        %680 = vmatprep.subr.bf16.mxu0 0
        %681 = vmatpush1.bf16.msra.mxu0 %v662
        %682 = vmatprep.subr.bf16.mxu0 0
        %683 = vmatpush1.bf16.msra.mxu0 %v661
        %684 = vmatprep.subr.bf16.mxu0 0
        %685 = vmatpush1.bf16.msra.mxu0 %v660
        %686 = vmatprep.subr.bf16.mxu0 0
        %687 = vmatpush1.bf16.msra.mxu0 %v659
        %688 = vmatprep.subr.bf16.mxu0 0
        %689 = vmatpush1.bf16.msra.mxu0 %v658
        %690 = vmatprep.subr.bf16.mxu0 0
        %691 = vmatpush2.bf16.msra.mxu0 0
        %692 = vmatprep.subr.bf16.mxu0 0
        %693 = vmatpush2.bf16.msra.mxu0 0
        %694 = vmatprep.subr.bf16.mxu0 0
        %695 = vmatpush2.bf16.msra.mxu0 0
        %696 = vmatprep.subr.bf16.mxu0 0
        %697 = vmatpush2.bf16.msra.mxu0 0
        %698 = vmatprep.subr.bf16.mxu0 0
        %699 = vmatpush2.bf16.msra.mxu0 0
        %700 = vmatprep.subr.bf16.mxu0 0
        %701 = vmatpush2.bf16.msra.mxu0 0
        %702 = vmatprep.subr.bf16.mxu0 0
        %703 = vmatpush2.bf16.msra.mxu0 0
        %704 = vmatprep.subr.bf16.mxu0 0
        %705 = vmatpush2.bf16.msra.mxu0 0
        %706 = vmatprep.mubr.bf16.mxu0 0
        %707 = vmatmul.mubr.bf16.gmra.mxu0 %v622
        %v708 = vpop.f32.mrf.mxu0
        %v709 = vadd.f32 0.0, %v708
        %v710 = vpop.f32.mrf.mxu0
        %v711 = vpop.f32.mrf.mxu0
        %v712 = vadd.f32 0.0, %v711
        %v713 = vpop.f32.mrf.mxu0
        %714 = vmatprep.mubr.bf16.mxu0 0
        %715 = vmatmul.mubr.bf16.gmra.mxu0 %v623
        %v716 = vpop.f32.mrf.mxu0
        %v717 = vadd.f32 0.0, %v716
        %v718 = vpop.f32.mrf.mxu0
        %v719 = vpop.f32.mrf.mxu0
        %v720 = vadd.f32 0.0, %v719
        %v721 = vpop.f32.mrf.mxu0
        %722 = vmatprep.mubr.bf16.mxu0 0
        %723 = vmatmul.mubr.bf16.gmra.mxu0 %v624
        %v724 = vpop.f32.mrf.mxu0
        %v725 = vadd.f32 0.0, %v724
        %v726 = vpop.f32.mrf.mxu0
        %v727 = vpop.f32.mrf.mxu0
        %v728 = vadd.f32 0.0, %v727
        %v729 = vpop.f32.mrf.mxu0
        %730 = vmatprep.mubr.bf16.mxu0 0
        %731 = vmatmul.mubr.bf16.gmra.mxu0 %v625
        %v732 = vpop.f32.mrf.mxu0
        %v733 = vadd.f32 0.0, %v732
        %v734 = vpop.f32.mrf.mxu0
        %v735 = vpop.f32.mrf.mxu0
        %v736 = vadd.f32 0.0, %v735
        %v737 = vpop.f32.mrf.mxu0
        %738 = vdwg.mxu0
        %v755 = vunpack.c.l.b16 %v590
        %v756 = vunpack.c.l.b16 %v591
        %v757 = vunpack.c.l.b16 %v592
        %v758 = vunpack.c.l.b16 %v593
        %v759 = vunpack.c.l.b16 %v594
        %v760 = vunpack.c.l.b16 %v595
        %v761 = vunpack.c.l.b16 %v596
        %v762 = vunpack.c.l.b16 %v597
        %v763 = vunpack.c.l.b16 %v598
        %v764 = vunpack.c.l.b16 %v599
        %v765 = vunpack.c.l.b16 %v600
        %v766 = vunpack.c.l.b16 %v601
        %v767 = vunpack.c.l.b16 %v602
        %v768 = vunpack.c.l.b16 %v603
        %v769 = vunpack.c.l.b16 %v604
        %v770 = vunpack.c.l.b16 %v605
        %v771 = vpack.c.b16 %v756, %v755
        %v772 = vpack.c.b16 %v758, %v757
        %v773 = vpack.c.b16 %v760, %v759
        %v774 = vpack.c.b16 %v762, %v761
        %v775 = vpack.c.b16 %v764, %v763
        %v776 = vpack.c.b16 %v766, %v765
        %v777 = vpack.c.b16 %v768, %v767
        %v778 = vpack.c.b16 %v770, %v769
        %787 = vmatprep.subr.bf16.mxu0 0
        %788 = vmatpush1.bf16.msra.mxu0 %v778
        %789 = vmatprep.subr.bf16.mxu0 0
        %790 = vmatpush1.bf16.msra.mxu0 %v777
        %791 = vmatprep.subr.bf16.mxu0 0
        %792 = vmatpush1.bf16.msra.mxu0 %v776
        %793 = vmatprep.subr.bf16.mxu0 0
        %794 = vmatpush1.bf16.msra.mxu0 %v775
        %795 = vmatprep.subr.bf16.mxu0 0
        %796 = vmatpush1.bf16.msra.mxu0 %v774
        %797 = vmatprep.subr.bf16.mxu0 0
        %798 = vmatpush1.bf16.msra.mxu0 %v773
        %799 = vmatprep.subr.bf16.mxu0 0
        %800 = vmatpush1.bf16.msra.mxu0 %v772
        %801 = vmatprep.subr.bf16.mxu0 0
        %802 = vmatpush1.bf16.msra.mxu0 %v771
        %803 = vmatprep.subr.bf16.mxu0 0
        %804 = vmatpush2.bf16.msra.mxu0 0
        %805 = vmatprep.subr.bf16.mxu0 0
        %806 = vmatpush2.bf16.msra.mxu0 0
        %807 = vmatprep.subr.bf16.mxu0 0
        %808 = vmatpush2.bf16.msra.mxu0 0
        %809 = vmatprep.subr.bf16.mxu0 0
        %810 = vmatpush2.bf16.msra.mxu0 0
        %811 = vmatprep.subr.bf16.mxu0 0
        %812 = vmatpush2.bf16.msra.mxu0 0
        %813 = vmatprep.subr.bf16.mxu0 0
        %814 = vmatpush2.bf16.msra.mxu0 0
        %815 = vmatprep.subr.bf16.mxu0 0
        %816 = vmatpush2.bf16.msra.mxu0 0
        %817 = vmatprep.subr.bf16.mxu0 0
        %818 = vmatpush2.bf16.msra.mxu0 0
        %819 = vmatprep.mubr.bf16.mxu0 0
        %820 = vmatmul.mubr.bf16.gmra.mxu0 %v504
        %v821 = vpop.f32.mrf.mxu0
        %v822 = vadd.f32 %v709, %v821
        %v823 = vpop.f32.mrf.mxu0
        %v824 = vpop.f32.mrf.mxu0
        %v825 = vadd.f32 %v712, %v824
        %v826 = vpop.f32.mrf.mxu0
        %827 = vmatprep.mubr.bf16.mxu0 0
        %828 = vmatmul.mubr.bf16.gmra.mxu0 %v505
        %v829 = vpop.f32.mrf.mxu0
        %v830 = vadd.f32 %v717, %v829
        %v831 = vpop.f32.mrf.mxu0
        %v832 = vpop.f32.mrf.mxu0
        %v833 = vadd.f32 %v720, %v832
        %v834 = vpop.f32.mrf.mxu0
        %835 = vmatprep.mubr.bf16.mxu0 0
        %836 = vmatmul.mubr.bf16.gmra.mxu0 %v506
        %v837 = vpop.f32.mrf.mxu0
        %v838 = vadd.f32 %v725, %v837
        %v839 = vpop.f32.mrf.mxu0
        %v840 = vpop.f32.mrf.mxu0
        %v841 = vadd.f32 %v728, %v840
        %v842 = vpop.f32.mrf.mxu0
        %843 = vmatprep.mubr.bf16.mxu0 0
        %844 = vmatmul.mubr.bf16.gmra.mxu0 %v507
        %v845 = vpop.f32.mrf.mxu0
        %v846 = vadd.f32 %v733, %v845
        %v847 = vpop.f32.mrf.mxu0
        %v848 = vpop.f32.mrf.mxu0
        %v849 = vadd.f32 %v736, %v848
        %v850 = vpop.f32.mrf.mxu0
        %851 = vdwg.mxu0
        %v852 = vadd.f32 %v822, %v825
        %v853 = vadd.f32 %v852, %v830
        %v854 = vadd.f32 %v853, %v833
        %v855 = vadd.f32 %v854, %v838
        %v856 = vadd.f32 %v855, %v841
        %v857 = vadd.f32 %v856, %v846
        %v858 = vadd.f32 %v857, %v849
        %v859 = vrot.slane %v858, 4
        %v860 = vadd.f32 %v858, %v859
        %v861 = vrot.slane %v860, 2
        %v862 = vadd.f32 %v860, %v861
        %v863 = vrot.slane %v862, 1
        %v864 = vadd.f32 %v862, %v863
        %v865 = vrcp.pop 64.0
        %v866 = vmul.f32 %v864, %v865
        %v867 = vsub.f32 %v822, %v866
        %v868 = vsub.f32 %v825, %v866
        %v869 = vsub.f32 %v830, %v866
        %v870 = vsub.f32 %v833, %v866
        %v871 = vsub.f32 %v838, %v866
        %v872 = vsub.f32 %v841, %v866
        %v873 = vsub.f32 %v846, %v866
        %v874 = vsub.f32 %v849, %v866
        %v875 = vmul.f32 %v867, %v867
        %v876 = vmul.f32 %v868, %v868
        %v877 = vmul.f32 %v869, %v869
        %v878 = vmul.f32 %v870, %v870
        %v879 = vmul.f32 %v871, %v871
        %v880 = vmul.f32 %v872, %v872
        %v881 = vmul.f32 %v873, %v873
        %v882 = vmul.f32 %v874, %v874
        %v883 = vadd.f32 %v875, %v876
        %v884 = vadd.f32 %v883, %v877
        %v885 = vadd.f32 %v884, %v878
        %v886 = vadd.f32 %v885, %v879
        %v887 = vadd.f32 %v886, %v880
        %v888 = vadd.f32 %v887, %v881
        %v889 = vadd.f32 %v888, %v882
        %v890 = vrot.slane %v889, 4
        %v891 = vadd.f32 %v889, %v890
        %v892 = vrot.slane %v891, 2
        %v893 = vadd.f32 %v891, %v892
        %v894 = vrot.slane %v893, 1
        %v895 = vadd.f32 %v893, %v894
        %v896 = vmul.f32 %v895, %v865
        %v897 = vadd.f32 %v896, 1e-05
        %v898 = vrsqrt.pop %v897
        %v899 = vmul.f32 %v867, %v898
        %v900 = vmul.f32 %v868, %v898
        %v901 = vmul.f32 %v869, %v898
        %v902 = vmul.f32 %v870, %v898
        %v903 = vmul.f32 %v871, %v898
        %v904 = vmul.f32 %v872, %v898
        %v905 = vmul.f32 %v873, %v898
        %v906 = vmul.f32 %v874, %v898
        %v907 = vmax.f32 %v899, 0.0
        %v908 = vmax.f32 %v900, 0.0
        %v909 = vmax.f32 %v901, 0.0
        %v910 = vmax.f32 %v902, 0.0
        %v911 = vmax.f32 %v903, 0.0
        %v912 = vmax.f32 %v904, 0.0
        %v913 = vmax.f32 %v905, 0.0
        %v914 = vmax.f32 %v906, 0.0
        %v915 = vpack.c.bf16 %v908, %v907
        %v916 = vpack.c.bf16 %v910, %v909
        %v917 = vpack.c.bf16 %v912, %v911
        %v918 = vpack.c.bf16 %v914, %v913
        %919 = vmatprep.subr.bf16.mxu0 0
        %920 = vmatpush1.bf16.msra.mxu0 0
        %921 = vmatprep.subr.bf16.mxu0 0
        %922 = vmatpush1.bf16.msra.mxu0 0
        %923 = vmatprep.subr.bf16.mxu0 0
        %924 = vmatpush1.bf16.msra.mxu0 0
        %925 = vmatprep.subr.bf16.mxu0 0
        %926 = vmatpush1.bf16.msra.mxu0 0
        %927 = vmatprep.subr.bf16.mxu0 0
        %928 = vmatpush1.bf16.msra.mxu0 %v918
        %929 = vmatprep.subr.bf16.mxu0 0
        %930 = vmatpush1.bf16.msra.mxu0 %v917
        %931 = vmatprep.subr.bf16.mxu0 0
        %932 = vmatpush1.bf16.msra.mxu0 %v916
        %933 = vmatprep.subr.bf16.mxu0 0
        %934 = vmatpush1.bf16.msra.mxu0 %v915
        %935 = vmatprep.subr.bf16.mxu0 0
        %936 = vmatpush2.bf16.msra.mxu0 0
        %937 = vmatprep.subr.bf16.mxu0 0
        %938 = vmatpush2.bf16.msra.mxu0 0
        %939 = vmatprep.subr.bf16.mxu0 0
        %940 = vmatpush2.bf16.msra.mxu0 0
        %941 = vmatprep.subr.bf16.mxu0 0
        %942 = vmatpush2.bf16.msra.mxu0 0
        %943 = vmatprep.subr.bf16.mxu0 0
        %944 = vmatpush2.bf16.msra.mxu0 0
        %945 = vmatprep.subr.bf16.mxu0 0
        %946 = vmatpush2.bf16.msra.mxu0 0
        %947 = vmatprep.subr.bf16.mxu0 0
        %948 = vmatpush2.bf16.msra.mxu0 0
        %949 = vmatprep.subr.bf16.mxu0 0
        %950 = vmatpush2.bf16.msra.mxu0 0
        %951 = vmatprep.mubr.bf16.mxu0 0
        %952 = vmatmul.mubr.bf16.gmra.mxu0 %v514
        %v953 = vpop.f32.mrf.mxu0
        %v954 = vadd.f32 0.0, %v953
        %v955 = vpop.f32.mrf.mxu0
        %v956 = vpop.f32.mrf.mxu0
        %v957 = vadd.f32 0.0, %v956
        %v958 = vpop.f32.mrf.mxu0
        %959 = vmatprep.mubr.bf16.mxu0 0
        %960 = vmatmul.mubr.bf16.gmra.mxu0 %v517
        %v961 = vpop.f32.mrf.mxu0
        %v962 = vadd.f32 0.0, %v961
        %v963 = vpop.f32.mrf.mxu0
        %v964 = vpop.f32.mrf.mxu0
        %v965 = vadd.f32 0.0, %v964
        %v966 = vpop.f32.mrf.mxu0
        %967 = vmatprep.mubr.bf16.mxu0 0
        %968 = vmatmul.mubr.bf16.gmra.mxu0 %v520
        %v969 = vpop.f32.mrf.mxu0
        %v970 = vadd.f32 0.0, %v969
        %v971 = vpop.f32.mrf.mxu0
        %v972 = vpop.f32.mrf.mxu0
        %v973 = vadd.f32 0.0, %v972
        %v974 = vpop.f32.mrf.mxu0
        %975 = vmatprep.mubr.bf16.mxu0 0
        %976 = vmatmul.mubr.bf16.gmra.mxu0 %v523
        %v977 = vpop.f32.mrf.mxu0
        %v978 = vadd.f32 0.0, %v977
        %v979 = vpop.f32.mrf.mxu0
        %v980 = vpop.f32.mrf.mxu0
        %v981 = vadd.f32 0.0, %v980
        %v982 = vpop.f32.mrf.mxu0
        %983 = vdwg.mxu0
        %v984 = vld [vmem:[#allocation10] sm:$0xf]
        %v985 = vld [vmem:[#allocation10 + $0x4] sm:$0xf]
        %v986 = vld [vmem:[#allocation10 + $0x8] sm:$0xf]
        %v987 = vld [vmem:[#allocation10 + $0xc] sm:$0xf]
        %v988 = vld [vmem:[#allocation10 + $0x10] sm:$0xf]
        %v989 = vld [vmem:[#allocation10 + $0x14] sm:$0xf]
        %v990 = vld [vmem:[#allocation10 + $0x18] sm:$0xf]
        %v991 = vld [vmem:[#allocation10 + $0x1c] sm:$0xf]
        %v992 = vld [vmem:[#allocation10 + $0x20] sm:$0xf]
        %v993 = vld [vmem:[#allocation10 + $0x24] sm:$0xf]
        %v994 = vld [vmem:[#allocation10 + $0x28] sm:$0xf]
        %v995 = vld [vmem:[#allocation10 + $0x2c] sm:$0xf]
        %v996 = vld [vmem:[#allocation10 + $0x30] sm:$0xf]
        %v997 = vld [vmem:[#allocation10 + $0x34] sm:$0xf]
        %v998 = vld [vmem:[#allocation10 + $0x38] sm:$0xf]
        %v999 = vld [vmem:[#allocation10 + $0x3c] sm:$0xf]
        %v1000 = vld [vmem:[#allocation11] sm:$0xf]
        %v1001 = vld [vmem:[#allocation11 + $0x4] sm:$0xf]
        %v1002 = vld [vmem:[#allocation11 + $0x8] sm:$0xf]
        %v1003 = vld [vmem:[#allocation11 + $0xc] sm:$0xf]
        %v1004 = vld [vmem:[#allocation11 + $0x10] sm:$0xf]
        %v1005 = vld [vmem:[#allocation11 + $0x14] sm:$0xf]
        %v1006 = vld [vmem:[#allocation11 + $0x18] sm:$0xf]
        %v1007 = vld [vmem:[#allocation11 + $0x1c] sm:$0xf]
        %v1008 = vld [vmem:[#allocation11 + $0x20] sm:$0xf]
        %v1009 = vld [vmem:[#allocation11 + $0x24] sm:$0xf]
        %v1010 = vld [vmem:[#allocation11 + $0x28] sm:$0xf]
        %v1011 = vld [vmem:[#allocation11 + $0x2c] sm:$0xf]
        %v1012 = vld [vmem:[#allocation11 + $0x30] sm:$0xf]
        %v1013 = vld [vmem:[#allocation11 + $0x34] sm:$0xf]
        %v1014 = vld [vmem:[#allocation11 + $0x38] sm:$0xf]
        %v1015 = vld [vmem:[#allocation11 + $0x3c] sm:$0xf]
        %v1016 = vpack.c.bf16 %v957, %v954
        %v1017 = vpack.c.bf16 %v965, %v962
        %v1018 = vpack.c.bf16 %v973, %v970
        %v1019 = vpack.c.bf16 %v981, %v978
        %v1036 = vunpack.c.l.b16 %v1000
        %v1037 = vunpack.c.l.b16 %v1001
        %v1038 = vunpack.c.l.b16 %v1002
        %v1039 = vunpack.c.l.b16 %v1003
        %v1040 = vunpack.c.l.b16 %v1004
        %v1041 = vunpack.c.l.b16 %v1005
        %v1042 = vunpack.c.l.b16 %v1006
        %v1043 = vunpack.c.l.b16 %v1007
        %v1044 = vunpack.c.l.b16 %v1008
        %v1045 = vunpack.c.l.b16 %v1009
        %v1046 = vunpack.c.l.b16 %v1010
        %v1047 = vunpack.c.l.b16 %v1011
        %v1048 = vunpack.c.l.b16 %v1012
        %v1049 = vunpack.c.l.b16 %v1013
        %v1050 = vunpack.c.l.b16 %v1014
        %v1051 = vunpack.c.l.b16 %v1015
        %v1052 = vpack.c.b16 %v1037, %v1036
        %v1053 = vpack.c.b16 %v1039, %v1038
        %v1054 = vpack.c.b16 %v1041, %v1040
        %v1055 = vpack.c.b16 %v1043, %v1042
        %v1056 = vpack.c.b16 %v1045, %v1044
        %v1057 = vpack.c.b16 %v1047, %v1046
        %v1058 = vpack.c.b16 %v1049, %v1048
        %v1059 = vpack.c.b16 %v1051, %v1050
        %1068 = vmatprep.subr.bf16.mxu0 0
        %1069 = vmatpush1.bf16.msra.mxu0 %v1059
        %1070 = vmatprep.subr.bf16.mxu0 0
        %1071 = vmatpush1.bf16.msra.mxu0 %v1058
        %1072 = vmatprep.subr.bf16.mxu0 0
        %1073 = vmatpush1.bf16.msra.mxu0 %v1057
        %1074 = vmatprep.subr.bf16.mxu0 0
        %1075 = vmatpush1.bf16.msra.mxu0 %v1056
        %1076 = vmatprep.subr.bf16.mxu0 0
        %1077 = vmatpush1.bf16.msra.mxu0 %v1055
        %1078 = vmatprep.subr.bf16.mxu0 0
        %1079 = vmatpush1.bf16.msra.mxu0 %v1054
        %1080 = vmatprep.subr.bf16.mxu0 0
        %1081 = vmatpush1.bf16.msra.mxu0 %v1053
        %1082 = vmatprep.subr.bf16.mxu0 0
        %1083 = vmatpush1.bf16.msra.mxu0 %v1052
        %1084 = vmatprep.subr.bf16.mxu0 0
        %1085 = vmatpush2.bf16.msra.mxu0 0
        %1086 = vmatprep.subr.bf16.mxu0 0
        %1087 = vmatpush2.bf16.msra.mxu0 0
        %1088 = vmatprep.subr.bf16.mxu0 0
        %1089 = vmatpush2.bf16.msra.mxu0 0
        %1090 = vmatprep.subr.bf16.mxu0 0
        %1091 = vmatpush2.bf16.msra.mxu0 0
        %1092 = vmatprep.subr.bf16.mxu0 0
        %1093 = vmatpush2.bf16.msra.mxu0 0
        %1094 = vmatprep.subr.bf16.mxu0 0
        %1095 = vmatpush2.bf16.msra.mxu0 0
        %1096 = vmatprep.subr.bf16.mxu0 0
        %1097 = vmatpush2.bf16.msra.mxu0 0
        %1098 = vmatprep.subr.bf16.mxu0 0
        %1099 = vmatpush2.bf16.msra.mxu0 0
        %1100 = vmatprep.mubr.bf16.mxu0 0
        %1101 = vmatmul.mubr.bf16.gmra.mxu0 %v1016
        %v1102 = vpop.f32.mrf.mxu0
        %v1103 = vadd.f32 0.0, %v1102
        %v1104 = vpop.f32.mrf.mxu0
        %v1105 = vpop.f32.mrf.mxu0
        %v1106 = vadd.f32 0.0, %v1105
        %v1107 = vpop.f32.mrf.mxu0
        %1108 = vmatprep.mubr.bf16.mxu0 0
        %1109 = vmatmul.mubr.bf16.gmra.mxu0 %v1017
        %v1110 = vpop.f32.mrf.mxu0
        %v1111 = vadd.f32 0.0, %v1110
        %v1112 = vpop.f32.mrf.mxu0
        %v1113 = vpop.f32.mrf.mxu0
        %v1114 = vadd.f32 0.0, %v1113
        %v1115 = vpop.f32.mrf.mxu0
        %1116 = vmatprep.mubr.bf16.mxu0 0
        %1117 = vmatmul.mubr.bf16.gmra.mxu0 %v1018
        %v1118 = vpop.f32.mrf.mxu0
        %v1119 = vadd.f32 0.0, %v1118
        %v1120 = vpop.f32.mrf.mxu0
        %v1121 = vpop.f32.mrf.mxu0
        %v1122 = vadd.f32 0.0, %v1121
        %v1123 = vpop.f32.mrf.mxu0
        %1124 = vmatprep.mubr.bf16.mxu0 0
        %1125 = vmatmul.mubr.bf16.gmra.mxu0 %v1019
        %v1126 = vpop.f32.mrf.mxu0
        %v1127 = vadd.f32 0.0, %v1126
        %v1128 = vpop.f32.mrf.mxu0
        %v1129 = vpop.f32.mrf.mxu0
        %v1130 = vadd.f32 0.0, %v1129
        %v1131 = vpop.f32.mrf.mxu0
        %1132 = vdwg.mxu0
        %v1149 = vunpack.c.l.b16 %v984
        %v1150 = vunpack.c.l.b16 %v985
        %v1151 = vunpack.c.l.b16 %v986
        %v1152 = vunpack.c.l.b16 %v987
        %v1153 = vunpack.c.l.b16 %v988
        %v1154 = vunpack.c.l.b16 %v989
        %v1155 = vunpack.c.l.b16 %v990
        %v1156 = vunpack.c.l.b16 %v991
        %v1157 = vunpack.c.l.b16 %v992
        %v1158 = vunpack.c.l.b16 %v993
        %v1159 = vunpack.c.l.b16 %v994
        %v1160 = vunpack.c.l.b16 %v995
        %v1161 = vunpack.c.l.b16 %v996
        %v1162 = vunpack.c.l.b16 %v997
        %v1163 = vunpack.c.l.b16 %v998
        %v1164 = vunpack.c.l.b16 %v999
        %v1165 = vpack.c.b16 %v1150, %v1149
        %v1166 = vpack.c.b16 %v1152, %v1151
        %v1167 = vpack.c.b16 %v1154, %v1153
        %v1168 = vpack.c.b16 %v1156, %v1155
        %v1169 = vpack.c.b16 %v1158, %v1157
        %v1170 = vpack.c.b16 %v1160, %v1159
        %v1171 = vpack.c.b16 %v1162, %v1161
        %v1172 = vpack.c.b16 %v1164, %v1163
        %1181 = vmatprep.subr.bf16.mxu0 0
        %1182 = vmatpush1.bf16.msra.mxu0 %v1172
        %1183 = vmatprep.subr.bf16.mxu0 0
        %1184 = vmatpush1.bf16.msra.mxu0 %v1171
        %1185 = vmatprep.subr.bf16.mxu0 0
        %1186 = vmatpush1.bf16.msra.mxu0 %v1170
        %1187 = vmatprep.subr.bf16.mxu0 0
        %1188 = vmatpush1.bf16.msra.mxu0 %v1169
        %1189 = vmatprep.subr.bf16.mxu0 0
        %1190 = vmatpush1.bf16.msra.mxu0 %v1168
        %1191 = vmatprep.subr.bf16.mxu0 0
        %1192 = vmatpush1.bf16.msra.mxu0 %v1167
        %1193 = vmatprep.subr.bf16.mxu0 0
        %1194 = vmatpush1.bf16.msra.mxu0 %v1166
        %1195 = vmatprep.subr.bf16.mxu0 0
        %1196 = vmatpush1.bf16.msra.mxu0 %v1165
        %1197 = vmatprep.subr.bf16.mxu0 0
        %1198 = vmatpush2.bf16.msra.mxu0 0
        %1199 = vmatprep.subr.bf16.mxu0 0
        %1200 = vmatpush2.bf16.msra.mxu0 0
        %1201 = vmatprep.subr.bf16.mxu0 0
        %1202 = vmatpush2.bf16.msra.mxu0 0
        %1203 = vmatprep.subr.bf16.mxu0 0
        %1204 = vmatpush2.bf16.msra.mxu0 0
        %1205 = vmatprep.subr.bf16.mxu0 0
        %1206 = vmatpush2.bf16.msra.mxu0 0
        %1207 = vmatprep.subr.bf16.mxu0 0
        %1208 = vmatpush2.bf16.msra.mxu0 0
        %1209 = vmatprep.subr.bf16.mxu0 0
        %1210 = vmatpush2.bf16.msra.mxu0 0
        %1211 = vmatprep.subr.bf16.mxu0 0
        %1212 = vmatpush2.bf16.msra.mxu0 0
        %1213 = vmatprep.mubr.bf16.mxu0 0
        %1214 = vmatmul.mubr.bf16.gmra.mxu0 %v915
        %v1215 = vpop.f32.mrf.mxu0
        %v1216 = vadd.f32 %v1103, %v1215
        %v1217 = vpop.f32.mrf.mxu0
        %v1218 = vpop.f32.mrf.mxu0
        %v1219 = vadd.f32 %v1106, %v1218
        %v1220 = vpop.f32.mrf.mxu0
        %1221 = vmatprep.mubr.bf16.mxu0 0
        %1222 = vmatmul.mubr.bf16.gmra.mxu0 %v916
        %v1223 = vpop.f32.mrf.mxu0
        %v1224 = vadd.f32 %v1111, %v1223
        %v1225 = vpop.f32.mrf.mxu0
        %v1226 = vpop.f32.mrf.mxu0
        %v1227 = vadd.f32 %v1114, %v1226
        %v1228 = vpop.f32.mrf.mxu0
        %1229 = vmatprep.mubr.bf16.mxu0 0
        %1230 = vmatmul.mubr.bf16.gmra.mxu0 %v917
        %v1231 = vpop.f32.mrf.mxu0
        %v1232 = vadd.f32 %v1119, %v1231
        %v1233 = vpop.f32.mrf.mxu0
        %v1234 = vpop.f32.mrf.mxu0
        %v1235 = vadd.f32 %v1122, %v1234
        %v1236 = vpop.f32.mrf.mxu0
        %1237 = vmatprep.mubr.bf16.mxu0 0
        %1238 = vmatmul.mubr.bf16.gmra.mxu0 %v918
        %v1239 = vpop.f32.mrf.mxu0
        %v1240 = vadd.f32 %v1127, %v1239
        %v1241 = vpop.f32.mrf.mxu0
        %v1242 = vpop.f32.mrf.mxu0
        %v1243 = vadd.f32 %v1130, %v1242
        %v1244 = vpop.f32.mrf.mxu0
        %1245 = vdwg.mxu0
        %v1246 = vadd.f32 %v1216, %v1219
        %v1247 = vadd.f32 %v1246, %v1224
        %v1248 = vadd.f32 %v1247, %v1227
        %v1249 = vadd.f32 %v1248, %v1232
        %v1250 = vadd.f32 %v1249, %v1235
        %v1251 = vadd.f32 %v1250, %v1240
        %v1252 = vadd.f32 %v1251, %v1243
        %v1253 = vrot.slane %v1252, 4
        %v1254 = vadd.f32 %v1252, %v1253
        %v1255 = vrot.slane %v1254, 2
        %v1256 = vadd.f32 %v1254, %v1255
        %v1257 = vrot.slane %v1256, 1
        %v1258 = vadd.f32 %v1256, %v1257
        %v1259 = vmul.f32 %v1258, %v865
        %v1260 = vsub.f32 %v1216, %v1259
        %v1261 = vsub.f32 %v1219, %v1259
        %v1262 = vsub.f32 %v1224, %v1259
        %v1263 = vsub.f32 %v1227, %v1259
        %v1264 = vsub.f32 %v1232, %v1259
        %v1265 = vsub.f32 %v1235, %v1259
        %v1266 = vsub.f32 %v1240, %v1259
        %v1267 = vsub.f32 %v1243, %v1259
        %v1268 = vmul.f32 %v1260, %v1260
        %v1269 = vmul.f32 %v1261, %v1261
        %v1270 = vmul.f32 %v1262, %v1262
        %v1271 = vmul.f32 %v1263, %v1263
        %v1272 = vmul.f32 %v1264, %v1264
        %v1273 = vmul.f32 %v1265, %v1265
        %v1274 = vmul.f32 %v1266, %v1266
        %v1275 = vmul.f32 %v1267, %v1267
        %v1276 = vadd.f32 %v1268, %v1269
        %v1277 = vadd.f32 %v1276, %v1270
        %v1278 = vadd.f32 %v1277, %v1271
        %v1279 = vadd.f32 %v1278, %v1272
        %v1280 = vadd.f32 %v1279, %v1273
        %v1281 = vadd.f32 %v1280, %v1274
        %v1282 = vadd.f32 %v1281, %v1275
        %v1283 = vrot.slane %v1282, 4
        %v1284 = vadd.f32 %v1282, %v1283
        %v1285 = vrot.slane %v1284, 2
        %v1286 = vadd.f32 %v1284, %v1285
        %v1287 = vrot.slane %v1286, 1
        %v1288 = vadd.f32 %v1286, %v1287
        %v1289 = vmul.f32 %v1288, %v865
        %v1290 = vadd.f32 %v1289, 1e-05
        %v1291 = vrsqrt.pop %v1290
        %v1292 = vmul.f32 %v1260, %v1291
        %v1293 = vmul.f32 %v1261, %v1291
        %v1294 = vmul.f32 %v1262, %v1291
        %v1295 = vmul.f32 %v1263, %v1291
        %v1296 = vmul.f32 %v1264, %v1291
        %v1297 = vmul.f32 %v1265, %v1291
        %v1298 = vmul.f32 %v1266, %v1291
        %v1299 = vmul.f32 %v1267, %v1291
        %v1300 = vmax.f32 %v1292, 0.0
        %v1301 = vmax.f32 %v1293, 0.0
        %v1302 = vmax.f32 %v1294, 0.0
        %v1303 = vmax.f32 %v1295, 0.0
        %v1304 = vmax.f32 %v1296, 0.0
        %v1305 = vmax.f32 %v1297, 0.0
        %v1306 = vmax.f32 %v1298, 0.0
        %v1307 = vmax.f32 %v1299, 0.0
        %v1308 = vpack.c.bf16 %v1301, %v1300
        %v1309 = vpack.c.bf16 %v1303, %v1302
        %v1310 = vpack.c.bf16 %v1305, %v1304
        %v1311 = vpack.c.bf16 %v1307, %v1306
        %1312 = vmatprep.subr.bf16.mxu0 0
        %1313 = vmatpush1.bf16.msra.mxu0 0
        %1314 = vmatprep.subr.bf16.mxu0 0
        %1315 = vmatpush1.bf16.msra.mxu0 0
        %1316 = vmatprep.subr.bf16.mxu0 0
        %1317 = vmatpush1.bf16.msra.mxu0 0
        %1318 = vmatprep.subr.bf16.mxu0 0
        %1319 = vmatpush1.bf16.msra.mxu0 0
        %1320 = vmatprep.subr.bf16.mxu0 0
        %1321 = vmatpush1.bf16.msra.mxu0 %v1311
        %1322 = vmatprep.subr.bf16.mxu0 0
        %1323 = vmatpush1.bf16.msra.mxu0 %v1310
        %1324 = vmatprep.subr.bf16.mxu0 0
        %1325 = vmatpush1.bf16.msra.mxu0 %v1309
        %1326 = vmatprep.subr.bf16.mxu0 0
        %1327 = vmatpush1.bf16.msra.mxu0 %v1308
        %1328 = vmatprep.subr.bf16.mxu0 0
        %1329 = vmatpush2.bf16.msra.mxu0 0
        %1330 = vmatprep.subr.bf16.mxu0 0
        %1331 = vmatpush2.bf16.msra.mxu0 0
        %1332 = vmatprep.subr.bf16.mxu0 0
        %1333 = vmatpush2.bf16.msra.mxu0 0
        %1334 = vmatprep.subr.bf16.mxu0 0
        %1335 = vmatpush2.bf16.msra.mxu0 0
        %1336 = vmatprep.subr.bf16.mxu0 0
        %1337 = vmatpush2.bf16.msra.mxu0 0
        %1338 = vmatprep.subr.bf16.mxu0 0
        %1339 = vmatpush2.bf16.msra.mxu0 0
        %1340 = vmatprep.subr.bf16.mxu0 0
        %1341 = vmatpush2.bf16.msra.mxu0 0
        %1342 = vmatprep.subr.bf16.mxu0 0
        %1343 = vmatpush2.bf16.msra.mxu0 0
        %1344 = vmatprep.mubr.bf16.mxu0 0
        %1345 = vmatmul.mubr.bf16.gmra.mxu0 %v514
        %v1346 = vpop.f32.mrf.mxu0
        %v1347 = vadd.f32 0.0, %v1346
        %v1348 = vpop.f32.mrf.mxu0
        %v1349 = vpop.f32.mrf.mxu0
        %v1350 = vadd.f32 0.0, %v1349
        %v1351 = vpop.f32.mrf.mxu0
        %1352 = vmatprep.mubr.bf16.mxu0 0
        %1353 = vmatmul.mubr.bf16.gmra.mxu0 %v517
        %v1354 = vpop.f32.mrf.mxu0
        %v1355 = vadd.f32 0.0, %v1354
        %v1356 = vpop.f32.mrf.mxu0
        %v1357 = vpop.f32.mrf.mxu0
        %v1358 = vadd.f32 0.0, %v1357
        %v1359 = vpop.f32.mrf.mxu0
        %1360 = vmatprep.mubr.bf16.mxu0 0
        %1361 = vmatmul.mubr.bf16.gmra.mxu0 %v520
        %v1362 = vpop.f32.mrf.mxu0
        %v1363 = vadd.f32 0.0, %v1362
        %v1364 = vpop.f32.mrf.mxu0
        %v1365 = vpop.f32.mrf.mxu0
        %v1366 = vadd.f32 0.0, %v1365
        %v1367 = vpop.f32.mrf.mxu0
        %1368 = vmatprep.mubr.bf16.mxu0 0
        %1369 = vmatmul.mubr.bf16.gmra.mxu0 %v523
        %v1370 = vpop.f32.mrf.mxu0
        %v1371 = vadd.f32 0.0, %v1370
        %v1372 = vpop.f32.mrf.mxu0
        %v1373 = vpop.f32.mrf.mxu0
        %v1374 = vadd.f32 0.0, %v1373
        %v1375 = vpop.f32.mrf.mxu0
        %1376 = vdwg.mxu0
        %v1377 = vld [vmem:[#allocation13] sm:$0xf]
        %v1378 = vld [vmem:[#allocation13 + $0x4] sm:$0xf]
        %v1379 = vld [vmem:[#allocation13 + $0x8] sm:$0xf]
        %v1380 = vld [vmem:[#allocation13 + $0xc] sm:$0xf]
        %v1381 = vld [vmem:[#allocation13 + $0x10] sm:$0xf]
        %v1382 = vld [vmem:[#allocation13 + $0x14] sm:$0xf]
        %v1383 = vld [vmem:[#allocation13 + $0x18] sm:$0xf]
        %v1384 = vld [vmem:[#allocation13 + $0x1c] sm:$0xf]
        %v1385 = vld [vmem:[#allocation13 + $0x20] sm:$0xf]
        %v1386 = vld [vmem:[#allocation13 + $0x24] sm:$0xf]
        %v1387 = vld [vmem:[#allocation13 + $0x28] sm:$0xf]
        %v1388 = vld [vmem:[#allocation13 + $0x2c] sm:$0xf]
        %v1389 = vld [vmem:[#allocation13 + $0x30] sm:$0xf]
        %v1390 = vld [vmem:[#allocation13 + $0x34] sm:$0xf]
        %v1391 = vld [vmem:[#allocation13 + $0x38] sm:$0xf]
        %v1392 = vld [vmem:[#allocation13 + $0x3c] sm:$0xf]
        %v1393 = vld [vmem:[#allocation14] sm:$0xf]
        %v1394 = vld [vmem:[#allocation14 + $0x4] sm:$0xf]
        %v1395 = vld [vmem:[#allocation14 + $0x8] sm:$0xf]
        %v1396 = vld [vmem:[#allocation14 + $0xc] sm:$0xf]
        %v1397 = vld [vmem:[#allocation14 + $0x10] sm:$0xf]
        %v1398 = vld [vmem:[#allocation14 + $0x14] sm:$0xf]
        %v1399 = vld [vmem:[#allocation14 + $0x18] sm:$0xf]
        %v1400 = vld [vmem:[#allocation14 + $0x1c] sm:$0xf]
        %v1401 = vld [vmem:[#allocation14 + $0x20] sm:$0xf]
        %v1402 = vld [vmem:[#allocation14 + $0x24] sm:$0xf]
        %v1403 = vld [vmem:[#allocation14 + $0x28] sm:$0xf]
        %v1404 = vld [vmem:[#allocation14 + $0x2c] sm:$0xf]
        %v1405 = vld [vmem:[#allocation14 + $0x30] sm:$0xf]
        %v1406 = vld [vmem:[#allocation14 + $0x34] sm:$0xf]
        %v1407 = vld [vmem:[#allocation14 + $0x38] sm:$0xf]
        %v1408 = vld [vmem:[#allocation14 + $0x3c] sm:$0xf]
        %v1409 = vpack.c.bf16 %v1350, %v1347
        %v1410 = vpack.c.bf16 %v1358, %v1355
        %v1411 = vpack.c.bf16 %v1366, %v1363
        %v1412 = vpack.c.bf16 %v1374, %v1371
        %v1429 = vunpack.c.l.b16 %v1393
        %v1430 = vunpack.c.l.b16 %v1394
        %v1431 = vunpack.c.l.b16 %v1395
        %v1432 = vunpack.c.l.b16 %v1396
        %v1433 = vunpack.c.l.b16 %v1397
        %v1434 = vunpack.c.l.b16 %v1398
        %v1435 = vunpack.c.l.b16 %v1399
        %v1436 = vunpack.c.l.b16 %v1400
        %v1437 = vunpack.c.l.b16 %v1401
        %v1438 = vunpack.c.l.b16 %v1402
        %v1439 = vunpack.c.l.b16 %v1403
        %v1440 = vunpack.c.l.b16 %v1404
        %v1441 = vunpack.c.l.b16 %v1405
        %v1442 = vunpack.c.l.b16 %v1406
        %v1443 = vunpack.c.l.b16 %v1407
        %v1444 = vunpack.c.l.b16 %v1408
        %v1445 = vpack.c.b16 %v1430, %v1429
        %v1446 = vpack.c.b16 %v1432, %v1431
        %v1447 = vpack.c.b16 %v1434, %v1433
        %v1448 = vpack.c.b16 %v1436, %v1435
        %v1449 = vpack.c.b16 %v1438, %v1437
        %v1450 = vpack.c.b16 %v1440, %v1439
        %v1451 = vpack.c.b16 %v1442, %v1441
        %v1452 = vpack.c.b16 %v1444, %v1443
        %1461 = vmatprep.subr.bf16.mxu0 0
        %1462 = vmatpush1.bf16.msra.mxu0 %v1452
        %1463 = vmatprep.subr.bf16.mxu0 0
        %1464 = vmatpush1.bf16.msra.mxu0 %v1451
        %1465 = vmatprep.subr.bf16.mxu0 0
        %1466 = vmatpush1.bf16.msra.mxu0 %v1450
        %1467 = vmatprep.subr.bf16.mxu0 0
        %1468 = vmatpush1.bf16.msra.mxu0 %v1449
        %1469 = vmatprep.subr.bf16.mxu0 0
        %1470 = vmatpush1.bf16.msra.mxu0 %v1448
        %1471 = vmatprep.subr.bf16.mxu0 0
        %1472 = vmatpush1.bf16.msra.mxu0 %v1447
        %1473 = vmatprep.subr.bf16.mxu0 0
        %1474 = vmatpush1.bf16.msra.mxu0 %v1446
        %1475 = vmatprep.subr.bf16.mxu0 0
        %1476 = vmatpush1.bf16.msra.mxu0 %v1445
        %1477 = vmatprep.subr.bf16.mxu0 0
        %1478 = vmatpush2.bf16.msra.mxu0 0
        %1479 = vmatprep.subr.bf16.mxu0 0
        %1480 = vmatpush2.bf16.msra.mxu0 0
        %1481 = vmatprep.subr.bf16.mxu0 0
        %1482 = vmatpush2.bf16.msra.mxu0 0
        %1483 = vmatprep.subr.bf16.mxu0 0
        %1484 = vmatpush2.bf16.msra.mxu0 0
        %1485 = vmatprep.subr.bf16.mxu0 0
        %1486 = vmatpush2.bf16.msra.mxu0 0
        %1487 = vmatprep.subr.bf16.mxu0 0
        %1488 = vmatpush2.bf16.msra.mxu0 0
        %1489 = vmatprep.subr.bf16.mxu0 0
        %1490 = vmatpush2.bf16.msra.mxu0 0
        %1491 = vmatprep.subr.bf16.mxu0 0
        %1492 = vmatpush2.bf16.msra.mxu0 0
        %1493 = vmatprep.mubr.bf16.mxu0 0
        %1494 = vmatmul.mubr.bf16.gmra.mxu0 %v1409
        %v1495 = vpop.f32.mrf.mxu0
        %v1496 = vadd.f32 0.0, %v1495
        %v1497 = vpop.f32.mrf.mxu0
        %v1498 = vpop.f32.mrf.mxu0
        %v1499 = vadd.f32 0.0, %v1498
        %v1500 = vpop.f32.mrf.mxu0
        %1501 = vmatprep.mubr.bf16.mxu0 0
        %1502 = vmatmul.mubr.bf16.gmra.mxu0 %v1410
        %v1503 = vpop.f32.mrf.mxu0
        %v1504 = vadd.f32 0.0, %v1503
        %v1505 = vpop.f32.mrf.mxu0
        %v1506 = vpop.f32.mrf.mxu0
        %v1507 = vadd.f32 0.0, %v1506
        %v1508 = vpop.f32.mrf.mxu0
        %1509 = vmatprep.mubr.bf16.mxu0 0
        %1510 = vmatmul.mubr.bf16.gmra.mxu0 %v1411
        %v1511 = vpop.f32.mrf.mxu0
        %v1512 = vadd.f32 0.0, %v1511
        %v1513 = vpop.f32.mrf.mxu0
        %v1514 = vpop.f32.mrf.mxu0
        %v1515 = vadd.f32 0.0, %v1514
        %v1516 = vpop.f32.mrf.mxu0
        %1517 = vmatprep.mubr.bf16.mxu0 0
        %1518 = vmatmul.mubr.bf16.gmra.mxu0 %v1412
        %v1519 = vpop.f32.mrf.mxu0
        %v1520 = vadd.f32 0.0, %v1519
        %v1521 = vpop.f32.mrf.mxu0
        %v1522 = vpop.f32.mrf.mxu0
        %v1523 = vadd.f32 0.0, %v1522
        %v1524 = vpop.f32.mrf.mxu0
        %1525 = vdwg.mxu0
        %v1542 = vunpack.c.l.b16 %v1377
        %v1543 = vunpack.c.l.b16 %v1378
        %v1544 = vunpack.c.l.b16 %v1379
        %v1545 = vunpack.c.l.b16 %v1380
        %v1546 = vunpack.c.l.b16 %v1381
        %v1547 = vunpack.c.l.b16 %v1382
        %v1548 = vunpack.c.l.b16 %v1383
        %v1549 = vunpack.c.l.b16 %v1384
        %v1550 = vunpack.c.l.b16 %v1385
        %v1551 = vunpack.c.l.b16 %v1386
        %v1552 = vunpack.c.l.b16 %v1387
        %v1553 = vunpack.c.l.b16 %v1388
        %v1554 = vunpack.c.l.b16 %v1389
        %v1555 = vunpack.c.l.b16 %v1390
        %v1556 = vunpack.c.l.b16 %v1391
        %v1557 = vunpack.c.l.b16 %v1392
        %v1558 = vpack.c.b16 %v1543, %v1542
        %v1559 = vpack.c.b16 %v1545, %v1544
        %v1560 = vpack.c.b16 %v1547, %v1546
        %v1561 = vpack.c.b16 %v1549, %v1548
        %v1562 = vpack.c.b16 %v1551, %v1550
        %v1563 = vpack.c.b16 %v1553, %v1552
        %v1564 = vpack.c.b16 %v1555, %v1554
        %v1565 = vpack.c.b16 %v1557, %v1556
        %1574 = vmatprep.subr.bf16.mxu0 0
        %1575 = vmatpush1.bf16.msra.mxu0 %v1565
        %1576 = vmatprep.subr.bf16.mxu0 0
        %1577 = vmatpush1.bf16.msra.mxu0 %v1564
        %1578 = vmatprep.subr.bf16.mxu0 0
        %1579 = vmatpush1.bf16.msra.mxu0 %v1563
        %1580 = vmatprep.subr.bf16.mxu0 0
        %1581 = vmatpush1.bf16.msra.mxu0 %v1562
        %1582 = vmatprep.subr.bf16.mxu0 0
        %1583 = vmatpush1.bf16.msra.mxu0 %v1561
        %1584 = vmatprep.subr.bf16.mxu0 0
        %1585 = vmatpush1.bf16.msra.mxu0 %v1560
        %1586 = vmatprep.subr.bf16.mxu0 0
        %1587 = vmatpush1.bf16.msra.mxu0 %v1559
        %1588 = vmatprep.subr.bf16.mxu0 0
        %1589 = vmatpush1.bf16.msra.mxu0 %v1558
        %1590 = vmatprep.subr.bf16.mxu0 0
        %1591 = vmatpush2.bf16.msra.mxu0 0
        %1592 = vmatprep.subr.bf16.mxu0 0
        %1593 = vmatpush2.bf16.msra.mxu0 0
        %1594 = vmatprep.subr.bf16.mxu0 0
        %1595 = vmatpush2.bf16.msra.mxu0 0
        %1596 = vmatprep.subr.bf16.mxu0 0
        %1597 = vmatpush2.bf16.msra.mxu0 0
        %1598 = vmatprep.subr.bf16.mxu0 0
        %1599 = vmatpush2.bf16.msra.mxu0 0
        %1600 = vmatprep.subr.bf16.mxu0 0
        %1601 = vmatpush2.bf16.msra.mxu0 0
        %1602 = vmatprep.subr.bf16.mxu0 0
        %1603 = vmatpush2.bf16.msra.mxu0 0
        %1604 = vmatprep.subr.bf16.mxu0 0
        %1605 = vmatpush2.bf16.msra.mxu0 0
        %1606 = vmatprep.mubr.bf16.mxu0 0
        %1607 = vmatmul.mubr.bf16.gmra.mxu0 %v1308
        %v1608 = vpop.f32.mrf.mxu0
        %v1609 = vadd.f32 %v1496, %v1608
        %v1610 = vpop.f32.mrf.mxu0
        %v1611 = vpop.f32.mrf.mxu0
        %v1612 = vadd.f32 %v1499, %v1611
        %v1613 = vpop.f32.mrf.mxu0
        %1614 = vmatprep.mubr.bf16.mxu0 0
        %1615 = vmatmul.mubr.bf16.gmra.mxu0 %v1309
        %v1616 = vpop.f32.mrf.mxu0
        %v1617 = vadd.f32 %v1504, %v1616
        %v1618 = vpop.f32.mrf.mxu0
        %v1619 = vpop.f32.mrf.mxu0
        %v1620 = vadd.f32 %v1507, %v1619
        %v1621 = vpop.f32.mrf.mxu0
        %1622 = vmatprep.mubr.bf16.mxu0 0
        %1623 = vmatmul.mubr.bf16.gmra.mxu0 %v1310
        %v1624 = vpop.f32.mrf.mxu0
        %v1625 = vadd.f32 %v1512, %v1624
        %v1626 = vpop.f32.mrf.mxu0
        %v1627 = vpop.f32.mrf.mxu0
        %v1628 = vadd.f32 %v1515, %v1627
        %v1629 = vpop.f32.mrf.mxu0
        %1630 = vmatprep.mubr.bf16.mxu0 0
        %1631 = vmatmul.mubr.bf16.gmra.mxu0 %v1311
        %v1632 = vpop.f32.mrf.mxu0
        %v1633 = vadd.f32 %v1520, %v1632
        %v1634 = vpop.f32.mrf.mxu0
        %v1635 = vpop.f32.mrf.mxu0
        %v1636 = vadd.f32 %v1523, %v1635
        %v1637 = vpop.f32.mrf.mxu0
        %1638 = vdwg.mxu0
        %v1639 = vlaneseq
        %v1640 = vand.u32 %v1639, 127
        %vm1641 = vcmp.lt.s32.totalorder %v1640, 16
        %v1642 = vsel %vm1641, %v1609, -1e+30
        %v1643 = vsel %vm1641, %v1612, -1e+30
        %v1644 = vsel %vm1641, %v1617, -1e+30
        %v1645 = vsel %vm1641, %v1620, -1e+30
        %v1646 = vsel %vm1641, %v1625, -1e+30
        %v1647 = vsel %vm1641, %v1628, -1e+30
        %v1648 = vsel %vm1641, %v1633, -1e+30
        %v1649 = vsel %vm1641, %v1636, -1e+30
        %1650 = vmax.xlane.f32.xlu0 %v1642
        %v1651 = vpop.xlane.xlu0 %1650
        %1652 = vmax.xlane.f32.xlu0 %v1643
        %v1653 = vpop.xlane.xlu0 %1652
        %1654 = vmax.xlane.f32.xlu0 %v1644
        %v1655 = vpop.xlane.xlu0 %1654
        %1656 = vmax.xlane.f32.xlu0 %v1645
        %v1657 = vpop.xlane.xlu0 %1656
        %1658 = vmax.xlane.f32.xlu0 %v1646
        %v1659 = vpop.xlane.xlu0 %1658
        %1660 = vmax.xlane.f32.xlu0 %v1647
        %v1661 = vpop.xlane.xlu0 %1660
        %1662 = vmax.xlane.f32.xlu0 %v1648
        %v1663 = vpop.xlane.xlu0 %1662
        %1664 = vmax.xlane.f32.xlu0 %v1649
        %v1665 = vpop.xlane.xlu0 %1664
        %v1666 = vsub.f32 %v1642, %v1651
        %v1667 = vsub.f32 %v1643, %v1653
        %v1668 = vsub.f32 %v1644, %v1655
        %v1669 = vsub.f32 %v1645, %v1657
        %v1670 = vsub.f32 %v1646, %v1659
        %v1671 = vsub.f32 %v1647, %v1661
        %v1672 = vsub.f32 %v1648, %v1663
        %v1673 = vsub.f32 %v1649, %v1665
        %v1674 = vmul.f32 %v1666, 1.442695
        %v1675 = vpow.pop %v1674
        %v1676 = vmul.f32 %v1667, 1.442695
        %v1677 = vpow.pop %v1676
        %v1678 = vmul.f32 %v1668, 1.442695
        %v1679 = vpow.pop %v1678
        %v1680 = vmul.f32 %v1669, 1.442695
        %v1681 = vpow.pop %v1680
        %v1682 = vmul.f32 %v1670, 1.442695
        %v1683 = vpow.pop %v1682
        %v1684 = vmul.f32 %v1671, 1.442695
        %v1685 = vpow.pop %v1684
        %v1686 = vmul.f32 %v1672, 1.442695
        %v1687 = vpow.pop %v1686
        %v1688 = vmul.f32 %v1673, 1.442695
        %v1689 = vpow.pop %v1688
        %1690 = vadd.xlane.f32.xlu0 %v1675
        %v1691 = vpop.xlane.xlu0 %1690
        %1692 = vadd.xlane.f32.xlu0 %v1677
        %v1693 = vpop.xlane.xlu0 %1692
        %1694 = vadd.xlane.f32.xlu0 %v1679
        %v1695 = vpop.xlane.xlu0 %1694
        %1696 = vadd.xlane.f32.xlu0 %v1681
        %v1697 = vpop.xlane.xlu0 %1696
        %1698 = vadd.xlane.f32.xlu0 %v1683
        %v1699 = vpop.xlane.xlu0 %1698
        %1700 = vadd.xlane.f32.xlu0 %v1685
        %v1701 = vpop.xlane.xlu0 %1700
        %1702 = vadd.xlane.f32.xlu0 %v1687
        %v1703 = vpop.xlane.xlu0 %1702
        %1704 = vadd.xlane.f32.xlu0 %v1689
        %v1705 = vpop.xlane.xlu0 %1704
        %v1706 = vlog2.pop %v1691
        %v1707 = vmul.f32 %v1706, 0.6931472
        %v1708 = vlog2.pop %v1693
        %v1709 = vmul.f32 %v1708, 0.6931472
        %v1710 = vlog2.pop %v1695
        %v1711 = vmul.f32 %v1710, 0.6931472
        %v1712 = vlog2.pop %v1697
        %v1713 = vmul.f32 %v1712, 0.6931472
        %v1714 = vlog2.pop %v1699
        %v1715 = vmul.f32 %v1714, 0.6931472
        %v1716 = vlog2.pop %v1701
        %v1717 = vmul.f32 %v1716, 0.6931472
        %v1718 = vlog2.pop %v1703
        %v1719 = vmul.f32 %v1718, 0.6931472
        %v1720 = vlog2.pop %v1705
        %v1721 = vmul.f32 %v1720, 0.6931472
        %v1722 = vsub.f32 %v1666, %v1707
        %v1723 = vsub.f32 %v1667, %v1709
        %v1724 = vsub.f32 %v1668, %v1711
        %v1725 = vsub.f32 %v1669, %v1713
        %v1726 = vsub.f32 %v1670, %v1715
        %v1727 = vsub.f32 %v1671, %v1717
        %v1728 = vsub.f32 %v1672, %v1719
        %v1729 = vsub.f32 %v1673, %v1721
        %v1730 = vsel %vm1641, %v1722, 0.0
        %v1731 = vsel %vm1641, %v1723, 0.0
        %v1732 = vsel %vm1641, %v1724, 0.0
        %v1733 = vsel %vm1641, %v1725, 0.0
        %v1734 = vsel %vm1641, %v1726, 0.0
        %v1735 = vsel %vm1641, %v1727, 0.0
        %v1736 = vsel %vm1641, %v1728, 0.0
        %v1737 = vsel %vm1641, %v1729, 0.0
        %1738 = vst [vmem:[%s450] sm:$0xff] %v1730
        %1739 = vst [vmem:[%s450 + $0x8] sm:$0xff] %v1731
        %1740 = vst [vmem:[%s450 + $0x10] sm:$0xff] %v1732
        %1741 = vst [vmem:[%s450 + $0x18] sm:$0xff] %v1733
        %1742 = vst [vmem:[%s450 + $0x20] sm:$0xff] %v1734
        %1743 = vst [vmem:[%s450 + $0x28] sm:$0xff] %v1735
        %1744 = vst [vmem:[%s450 + $0x30] sm:$0xff] %v1736
        %1745 = vst [vmem:[%s450 + $0x38] sm:$0xff] %v1737
        %s1746 = sand.u32 %s217, 1
        %s1747 = scalar_lea.sflag [#allocation4], %s1746
        %s1748 = sand.u32 %s217, 1
        %s1749 = smul.addr %s1748, 64
        %s1750 = scalar_lea.vmem [#allocation16], %s1749
        // Predicated region
        $region85: #{tpu_custom_call.1} parent=51 // pred_check
          %p1751 = pneg %p227
        $region86: #{tpu_custom_call.1} parent=51 // pred_check_branch
          %1753 = sbr.rel (%p1751) target = $region88
        $region87: #{tpu_custom_call.1} parent=51 // pred_region
          %s1755 = ssub.s32 1024, 1024
          %1756 = vsyncadd %s1747, %s1755
          %s1757 = smul.addr %s31, 8
          %s1758 = smul.addr %s1757, 128
          %s1759 = scalar_lea.hbm %s8, %s1758
          %s1760 = sshll.u32 %s1750, 4
          %s1761 = int_to_ptr.vmem [resolvable:$true] %s1760
          %1766 = dma.vmem_to_hbm [thread:$0]  %s1761, 1024, %s1759, %s1747, 128, 128, 8
        $region88: #{tpu_custom_call.1} parent=51 // pred_fallthru
          _
      $region52: #{tpu_custom_call.1} parent=5 // pred_fallthru
        _
      %p1767 = scmp.le.s32.totalorder 2, %s26
      // Predicated region
      $region89: #{tpu_custom_call.1} parent=5 // pred_check
        %p1768 = pneg %p1767
      $region90: #{tpu_custom_call.1} parent=5 // pred_check_branch
        %1770 = sbr.rel (%p1768) target = $region92
      $region91: #{tpu_custom_call.1} parent=5 // pred_region
        %s1771 = ssub.s32 %s26, 2
        // Predicated region
        $region93: #{tpu_custom_call.1} parent=91 // pred_check
          %p1772 = pneg %p233
        $region94: #{tpu_custom_call.1} parent=91 // pred_check_branch
          %1774 = sbr.rel (%p1772) target = $region96
        $region95: #{tpu_custom_call.1} parent=91 // pred_region
          %s1775 = sand.u32 %s218, 1
          %s1776 = scalar_lea.sflag [#allocation4], %s1775
          %s1777 = sand.u32 %s218, 1
          %s1778 = smul.addr %s1777, 64
          %s1779 = scalar_lea.vmem [#allocation16], %s1778
          %1780 = dma.done %s1776, 1024
        $region96: #{tpu_custom_call.1} parent=91 // pred_fallthru
          _
      $region92: #{tpu_custom_call.1} parent=5 // pred_fallthru
        _
    $region6: #{tpu_custom_call.1} parent=1 // loop_footer
      %s30 = sadd.s32 1, %s26
    $region7: #{tpu_custom_call.1} parent=1 // loop_footer_branch
      %25 = sbr.rel target = $region3
    $region8: #{tpu_custom_call.1} parent=1 // loop_exit
      _
    %1781 = vsyncpa [#allocation3], 1
    %s1782 = scalar_lea.sflag [#allocation3], 1
    %1783 = vsyncpa %s1782, 1
    %1784 = vsyncpa [#allocation6], 1
    %s1785 = scalar_lea.sflag [#allocation6], 1
    %1786 = vsyncpa %s1785, 1
    %1787 = vsyncpa [#allocation9], 1
    %1788 = vsyncpa [#allocation12], 1
    %1789 = vsyncpa [#allocation15], 1
    %1790 = vsyncpa [#allocation4], 1
    %s1791 = scalar_lea.sflag [#allocation4], 1
    %1792 = vsyncpa %s1791, 1

</llo_original>
